<compile_context>
chip_gen: v5e
topology: v5e:2x2
jax: 0.10.0
libtpu: 0.0.40
codegen_flags: <defaults>
</compile_context>

<pallas_src>
import functools

import jax
import jax.numpy as jnp
from jax import lax
from jax.experimental import pallas as pl
from jax.experimental.pallas import tpu as pltpu


def _relu_conv_kernel(x_ref, w_ref, o_ref, patches_ref, *, KH, KW, W_out, TH, C_in):
    """One (batch, row-tile) step of relu + stride-1 valid conv on the padded input.

    x_ref:       (1, Hp, Wp, C_in)        bf16 padded NHWC image (resident across row tiles)
    w_ref:       (C_out_pad, KH*KW*C_in)  bf16 weight, column index = (kh*KW + kw)*C_in + ci
    o_ref:       (1, C_out_pad, TH*W_out) f32 channel-major (lane-dense) output tile
    patches_ref: (TH*W_out, KH*KW*C_in)   bf16 VMEM scratch (im2col buffer)
    """
    r = pl.program_id(1)
    row0 = pl.multiple_of(r * TH, TH)

    # Build the im2col buffer once per step (ReLU fused on load; zero padding is
    # ReLU-invariant, so relu-then-pad == pad-then-relu).
    for kh in range(KH):
        rows = x_ref[0, pl.ds(row0 + kh, TH), :, :]                # (TH, Wp, C_in) bf16
        rows = jnp.maximum(rows.astype(jnp.float32), 0.0).astype(jnp.bfloat16)
        for kw in range(KW):
            tap = kh * KW + kw
            slab = rows[:, kw:kw + W_out, :].reshape(TH * W_out, C_in)
            patches_ref[:, tap * C_in:(tap + 1) * C_in] = slab

    # Single MXU contraction over K = KH*KW*C_in; result is already lane-dense
    # (C_out_pad, TH*W_out) and goes straight to the output (no accumulator chain).
    acc = lax.dot_general(
        w_ref[...], patches_ref[...],
        dimension_numbers=(((1,), (1,)), ((), ())),
        preferred_element_type=jnp.float32)
    o_ref[0] = acc.astype(o_ref.dtype)


def _module_config(kernel_size, stride, padding):
    """Replicates BasicConv2d.__init__ branch logic -> (upsample, conv_stride, conv_pad)."""
    if stride != 1:
        return 2, stride - 1, padding + 1
    elif padding == 0 and kernel_size > 1:
        return 1, stride, kernel_size // 2
    else:
        return 1, stride, padding


def _pick_row_tile(H_out, W_out):
    """Pick an output-row tile TH (divisor of H_out) with lane-dense TH*W_out if possible."""
    divisors = [d for d in range(1, H_out + 1) if H_out % d == 0]
    for d in divisors:                       # prefer moderate, 128-aligned flattened tiles
        if (d * W_out) % 128 == 0 and 128 <= d * W_out <= 2048:
            return d
    for d in divisors:
        if (d * W_out) % 128 == 0:
            return d
    return H_out                             # fallback: single tile (full-dim block is legal)


def basic_conv2d(x_nchw, weight_oihw, kernel_size, stride=1, padding=0):
    up_factor, conv_stride, conv_pad = _module_config(kernel_size, stride, padding)
    if conv_stride != 1:
        # TODO(synk): strided conv (original module stride > 2) not implemented in-kernel.
        raise NotImplementedError("conv stride > 1 not supported")

    N, C_in, H, W = x_nchw.shape
    C_out, _, KH, KW = weight_oihw.shape

    # NCHW -> NHWC, bf16 storage (f32 accumulation happens in-kernel on the MXU).
    x = jnp.transpose(x_nchw, (0, 2, 3, 1)).astype(jnp.bfloat16)

    # Nearest-neighbour upsample (only taken on the module's stride != 1 branch).
    if up_factor > 1:
        # TODO(synk): fold the nearest upsample into the kernel's row indexing to avoid
        # writing/reading a 4x larger intermediate to HBM.
        x = jnp.repeat(jnp.repeat(x, up_factor, axis=1), up_factor, axis=2)

    # Spatial zero padding (glue).
    xp = jnp.pad(x, ((0, 0), (conv_pad, conv_pad), (conv_pad, conv_pad), (0, 0)))
    Hp, Wp = xp.shape[1], xp.shape[2]
    H_out = Hp - KH + 1
    W_out = Wp - KW + 1

    # OIHW -> (Cout, KH*KW*Cin), column index (kh*KW + kw)*Cin + ci, Cout padded to /8.
    K = KH * KW * C_in
    w2 = jnp.transpose(weight_oihw, (0, 2, 3, 1)).reshape(C_out, K).astype(jnp.bfloat16)
    C_out_pad = ((C_out + 7) // 8) * 8
    if C_out_pad != C_out:
        w2 = jnp.pad(w2, ((0, C_out_pad - C_out), (0, 0)))

    TH = _pick_row_tile(H_out, W_out)
    n_row_tiles = H_out // TH

    kernel = functools.partial(_relu_conv_kernel,
                               KH=KH, KW=KW, W_out=W_out, TH=TH, C_in=C_in)

    cost = pl.CostEstimate(
        flops=2 * N * H_out * W_out * KH * KW * C_in * C_out,
        transcendentals=0,
        bytes_accessed=int(xp.size) * 2 + int(w2.size) * 2
                       + N * C_out_pad * H_out * W_out * 4)

    out_t = pl.pallas_call(
        kernel,
        out_shape=jax.ShapeDtypeStruct((N, C_out_pad, H_out * W_out), jnp.float32),
        grid_spec=pltpu.PrefetchScalarGridSpec(
            num_scalar_prefetch=0,
            grid=(N, n_row_tiles),
            in_specs=[
                # Padded image: block index constant in r -> stays resident across row tiles.
                pl.BlockSpec((1, Hp, Wp, C_in), lambda n, r: (n, 0, 0, 0)),
                # Weight: resident across the whole grid.
                pl.BlockSpec((C_out_pad, K), lambda n, r: (0, 0)),
            ],
            out_specs=pl.BlockSpec((1, C_out_pad, TH * W_out), lambda n, r: (n, 0, r)),
            scratch_shapes=[pltpu.VMEM((TH * W_out, K), jnp.bfloat16)],
        ),
        compiler_params=pltpu.CompilerParams(
            dimension_semantics=("parallel", "parallel"),
            vmem_limit_bytes=32 * 1024 * 1024),
        cost_estimate=cost,
    )(xp, w2)

    # Channel-major (N, Cout, H*W) output is already NCHW after the reshape.
    return out_t[:, :C_out, :].reshape(N, C_out, H_out, W_out)


def _reference(x_nchw, weight_oihw, kernel_size, stride, padding):
    up_factor, conv_stride, conv_pad = _module_config(kernel_size, stride, padding)
    x = jax.nn.relu(x_nchw.astype(jnp.float32))
    if up_factor > 1:
        x = jnp.repeat(jnp.repeat(x, up_factor, axis=2), up_factor, axis=3)
    return lax.conv_general_dilated(
        x, weight_oihw.astype(jnp.float32),
        window_strides=(conv_stride, conv_stride),
        padding=[(conv_pad, conv_pad), (conv_pad, conv_pad)],
        dimension_numbers=("NCHW", "OIHW", "NCHW"))


if __name__ == "__main__":
    key = jax.random.PRNGKey(0)
    kx, kw = jax.random.split(key)

    # BasicConv2d(in_channels=4, out_channels=8, kernel_size=3)  ->  branch:
    # Upsample(scale_factor=1) + Conv2d(k=3, stride=1, padding=1, bias=False)
    N, C_in, H, W = 2, 4, 16, 16
    C_out, KSZ = 8, 3

    x = jax.random.normal(kx, (N, C_in, H, W), dtype=jnp.float32)
    weight = jax.random.normal(kw, (C_out, C_in, KSZ, KSZ), dtype=jnp.float32) * 0.1

    out = basic_conv2d(x, weight, kernel_size=KSZ, stride=1, padding=0)
    out = jax.block_until_ready(out)

    # Compare against an f32 reference on the same bf16-rounded operands.
    x_ref = x.astype(jnp.bfloat16).astype(jnp.float32)
    w_ref = weight.astype(jnp.bfloat16).astype(jnp.float32)
    ref = _reference(x_ref, w_ref, KSZ, 1, 0)

    assert out.shape == (N, C_out, H, W), out.shape
    err = float(jnp.max(jnp.abs(out - ref)))
    assert err < 1e-2, err
    print("KERNEL_OK")
</pallas_src>

<mosaic_0001>
module attributes {stable_mosaic.version = 11 : i64} {
  func.func @_relu_conv_kernel(%arg0: i32, %arg1: i32, %arg2: memref<1x18x18x4xbf16, #tpu.memory_space<vmem>>, %arg3: memref<8x36xbf16, #tpu.memory_space<vmem>>, %arg4: memref<1x8x128xf32, #tpu.memory_space<vmem>>, %arg5: memref<128x36xbf16, #tpu.memory_space<vmem>>) attributes {dimension_semantics = [#tpu.dimension_semantics<parallel>, #tpu.dimension_semantics<parallel>], iteration_bounds = array<i64: 2, 2>, scalar_prefetch = 0 : i64, scratch_operands = 1 : i64, tpu.core_type = #tpu.core_type<tc>, window_params = [{transform_indices = @transform_0, window_bounds = array<i64: 1, 18, 18, 4>}, {pipeline_mode = #tpu.pipeline_mode<synchronous>, transform_indices = @transform_1, window_bounds = array<i64: 8, 36>}, {transform_indices = @transform_2, window_bounds = array<i64: 1, 8, 128>}]} {
    %c8_i32 = arith.constant 8 : i32
    %0 = arith.muli %arg1, %c8_i32 : i32
    %1 = tpu.assume_multiple %0, 8 : i32
    %c0_i32 = arith.constant 0 : i32
    %2 = arith.addi %1, %c0_i32 : i32
    %c0 = arith.constant 0 : index
    %3 = arith.index_cast %2 : i32 to index
    %c0_0 = arith.constant 0 : index
    %c0_1 = arith.constant 0 : index
    %4 = vector.load %arg2[%c0, %3, %c0_0, %c0_1] : memref<1x18x18x4xbf16, #tpu.memory_space<vmem>>, vector<1x8x18x4xbf16>
    %5 = vector.shape_cast %4 : vector<1x8x18x4xbf16> to vector<8x18x4xbf16>
    %6 = arith.extf %5 : vector<8x18x4xbf16> to vector<8x18x4xf32>
    %cst = arith.constant 0.000000e+00 : f32
    %7 = vector.broadcast %cst : f32 to vector<8x18x4xf32>
    %8 = arith.maximumf %6, %7 : vector<8x18x4xf32>
    %9 = arith.truncf %8 : vector<8x18x4xf32> to vector<8x18x4xbf16>
    %10 = vector.extract_strided_slice %9 {offsets = [0, 0, 0], sizes = [8, 16, 4], strides = [1, 1, 1]} : vector<8x18x4xbf16> to vector<8x16x4xbf16>
    %11 = vector.shape_cast %10 : vector<8x16x4xbf16> to vector<128x4xbf16>
    %c0_2 = arith.constant 0 : index
    %c0_3 = arith.constant 0 : index
    %12 = vector.load %arg5[%c0_2, %c0_3] : memref<128x36xbf16, #tpu.memory_space<vmem>>, vector<128x4xbf16>
    tpu.vector_store %arg5[%c0_2, %c0_3], %11 {strides = array<i32>} : memref<128x36xbf16, #tpu.memory_space<vmem>>, vector<128x4xbf16>,
    %13 = vector.extract_strided_slice %9 {offsets = [0, 1, 0], sizes = [8, 16, 4], strides = [1, 1, 1]} : vector<8x18x4xbf16> to vector<8x16x4xbf16>
    %14 = vector.shape_cast %13 : vector<8x16x4xbf16> to vector<128x4xbf16>
    %c0_4 = arith.constant 0 : index
    %c4 = arith.constant 4 : index
    %15 = vector.load %arg5[%c0_4, %c4] : memref<128x36xbf16, #tpu.memory_space<vmem>>, vector<128x4xbf16>
    tpu.vector_store %arg5[%c0_4, %c4], %14 {strides = array<i32>} : memref<128x36xbf16, #tpu.memory_space<vmem>>, vector<128x4xbf16>,
    %16 = vector.extract_strided_slice %9 {offsets = [0, 2, 0], sizes = [8, 16, 4], strides = [1, 1, 1]} : vector<8x18x4xbf16> to vector<8x16x4xbf16>
    %17 = vector.shape_cast %16 : vector<8x16x4xbf16> to vector<128x4xbf16>
    %c0_5 = arith.constant 0 : index
    %c8 = arith.constant 8 : index
    %18 = vector.load %arg5[%c0_5, %c8] : memref<128x36xbf16, #tpu.memory_space<vmem>>, vector<128x4xbf16>
    tpu.vector_store %arg5[%c0_5, %c8], %17 {strides = array<i32>} : memref<128x36xbf16, #tpu.memory_space<vmem>>, vector<128x4xbf16>,
    %c1_i32 = arith.constant 1 : i32
    %19 = arith.addi %1, %c1_i32 : i32
    %c0_6 = arith.constant 0 : index
    %20 = arith.index_cast %19 : i32 to index
    %c0_7 = arith.constant 0 : index
    %c0_8 = arith.constant 0 : index
    %21 = vector.load %arg2[%c0_6, %20, %c0_7, %c0_8] : memref<1x18x18x4xbf16, #tpu.memory_space<vmem>>, vector<1x8x18x4xbf16>
    %22 = vector.shape_cast %21 : vector<1x8x18x4xbf16> to vector<8x18x4xbf16>
    %23 = arith.extf %22 : vector<8x18x4xbf16> to vector<8x18x4xf32>
    %cst_9 = arith.constant 0.000000e+00 : f32
    %24 = vector.broadcast %cst_9 : f32 to vector<8x18x4xf32>
    %25 = arith.maximumf %23, %24 : vector<8x18x4xf32>
    %26 = arith.truncf %25 : vector<8x18x4xf32> to vector<8x18x4xbf16>
    %27 = vector.extract_strided_slice %26 {offsets = [0, 0, 0], sizes = [8, 16, 4], strides = [1, 1, 1]} : vector<8x18x4xbf16> to vector<8x16x4xbf16>
    %28 = vector.shape_cast %27 : vector<8x16x4xbf16> to vector<128x4xbf16>
    %c0_10 = arith.constant 0 : index
    %c12 = arith.constant 12 : index
    %29 = vector.load %arg5[%c0_10, %c12] : memref<128x36xbf16, #tpu.memory_space<vmem>>, vector<128x4xbf16>
    tpu.vector_store %arg5[%c0_10, %c12], %28 {strides = array<i32>} : memref<128x36xbf16, #tpu.memory_space<vmem>>, vector<128x4xbf16>,
    %30 = vector.extract_strided_slice %26 {offsets = [0, 1, 0], sizes = [8, 16, 4], strides = [1, 1, 1]} : vector<8x18x4xbf16> to vector<8x16x4xbf16>
    %31 = vector.shape_cast %30 : vector<8x16x4xbf16> to vector<128x4xbf16>
    %c0_11 = arith.constant 0 : index
    %c16 = arith.constant 16 : index
    %32 = vector.load %arg5[%c0_11, %c16] : memref<128x36xbf16, #tpu.memory_space<vmem>>, vector<128x4xbf16>
    tpu.vector_store %arg5[%c0_11, %c16], %31 {strides = array<i32>} : memref<128x36xbf16, #tpu.memory_space<vmem>>, vector<128x4xbf16>,
    %33 = vector.extract_strided_slice %26 {offsets = [0, 2, 0], sizes = [8, 16, 4], strides = [1, 1, 1]} : vector<8x18x4xbf16> to vector<8x16x4xbf16>
    %34 = vector.shape_cast %33 : vector<8x16x4xbf16> to vector<128x4xbf16>
    %c0_12 = arith.constant 0 : index
    %c20 = arith.constant 20 : index
    %35 = vector.load %arg5[%c0_12, %c20] : memref<128x36xbf16, #tpu.memory_space<vmem>>, vector<128x4xbf16>
    tpu.vector_store %arg5[%c0_12, %c20], %34 {strides = array<i32>} : memref<128x36xbf16, #tpu.memory_space<vmem>>, vector<128x4xbf16>,
    %c2_i32 = arith.constant 2 : i32
    %36 = arith.addi %1, %c2_i32 : i32
    %c0_13 = arith.constant 0 : index
    %37 = arith.index_cast %36 : i32 to index
    %c0_14 = arith.constant 0 : index
    %c0_15 = arith.constant 0 : index
    %38 = vector.load %arg2[%c0_13, %37, %c0_14, %c0_15] : memref<1x18x18x4xbf16, #tpu.memory_space<vmem>>, vector<1x8x18x4xbf16>
    %39 = vector.shape_cast %38 : vector<1x8x18x4xbf16> to vector<8x18x4xbf16>
    %40 = arith.extf %39 : vector<8x18x4xbf16> to vector<8x18x4xf32>
    %cst_16 = arith.constant 0.000000e+00 : f32
    %41 = vector.broadcast %cst_16 : f32 to vector<8x18x4xf32>
    %42 = arith.maximumf %40, %41 : vector<8x18x4xf32>
    %43 = arith.truncf %42 : vector<8x18x4xf32> to vector<8x18x4xbf16>
    %44 = vector.extract_strided_slice %43 {offsets = [0, 0, 0], sizes = [8, 16, 4], strides = [1, 1, 1]} : vector<8x18x4xbf16> to vector<8x16x4xbf16>
    %45 = vector.shape_cast %44 : vector<8x16x4xbf16> to vector<128x4xbf16>
    %c0_17 = arith.constant 0 : index
    %c24 = arith.constant 24 : index
    %46 = vector.load %arg5[%c0_17, %c24] : memref<128x36xbf16, #tpu.memory_space<vmem>>, vector<128x4xbf16>
    tpu.vector_store %arg5[%c0_17, %c24], %45 {strides = array<i32>} : memref<128x36xbf16, #tpu.memory_space<vmem>>, vector<128x4xbf16>,
    %47 = vector.extract_strided_slice %43 {offsets = [0, 1, 0], sizes = [8, 16, 4], strides = [1, 1, 1]} : vector<8x18x4xbf16> to vector<8x16x4xbf16>
    %48 = vector.shape_cast %47 : vector<8x16x4xbf16> to vector<128x4xbf16>
    %c0_18 = arith.constant 0 : index
    %c28 = arith.constant 28 : index
    %49 = vector.load %arg5[%c0_18, %c28] : memref<128x36xbf16, #tpu.memory_space<vmem>>, vector<128x4xbf16>
    tpu.vector_store %arg5[%c0_18, %c28], %48 {strides = array<i32>} : memref<128x36xbf16, #tpu.memory_space<vmem>>, vector<128x4xbf16>,
    %50 = vector.extract_strided_slice %43 {offsets = [0, 2, 0], sizes = [8, 16, 4], strides = [1, 1, 1]} : vector<8x18x4xbf16> to vector<8x16x4xbf16>
    %51 = vector.shape_cast %50 : vector<8x16x4xbf16> to vector<128x4xbf16>
    %c0_19 = arith.constant 0 : index
    %c32 = arith.constant 32 : index
    %52 = vector.load %arg5[%c0_19, %c32] : memref<128x36xbf16, #tpu.memory_space<vmem>>, vector<128x4xbf16>
    tpu.vector_store %arg5[%c0_19, %c32], %51 {strides = array<i32>} : memref<128x36xbf16, #tpu.memory_space<vmem>>, vector<128x4xbf16>,
    %c0_20 = arith.constant 0 : index
    %c0_21 = arith.constant 0 : index
    %53 = vector.load %arg3[%c0_20, %c0_21] : memref<8x36xbf16, #tpu.memory_space<vmem>>, vector<8x36xbf16>
    %c0_22 = arith.constant 0 : index
    %c0_23 = arith.constant 0 : index
    %54 = vector.load %arg5[%c0_22, %c0_23] : memref<128x36xbf16, #tpu.memory_space<vmem>>, vector<128x36xbf16>
    %cst_24 = arith.constant dense<0.000000e+00> : vector<8x128xf32>
    %55 = tpu.matmul %53, %54, %cst_24 {dimension_numbers = #tpu.dot_dimension_numbers<[1], [1], [0], [0], [0, 0, 1, 0], [], []>} : vector<8x36xbf16>, vector<128x36xbf16>, vector<8x128xf32> -> vector<8x128xf32>
    %c0_25 = arith.constant 0 : index
    %c0_26 = arith.constant 0 : index
    %c0_27 = arith.constant 0 : index
    %56 = vector.load %arg4[%c0_25, %c0_26, %c0_27] : memref<1x8x128xf32, #tpu.memory_space<vmem>>, vector<1x8x128xf32>
    %57 = vector.shape_cast %56 : vector<1x8x128xf32> to vector<8x128xf32>
    %58 = vector.shape_cast %55 : vector<8x128xf32> to vector<1x8x128xf32>
    tpu.vector_store %arg4[%c0_25, %c0_26, %c0_27], %58 {strides = array<i32>} : memref<1x8x128xf32, #tpu.memory_space<vmem>>, vector<1x8x128xf32>,
    return
  }
  func.func @transform_0(%arg0: i32, %arg1: i32) -> (i32, i32, i32, i32) {
    %c0_i32 = arith.constant 0 : i32
    %c0_i32_0 = arith.constant 0 : i32
    %c0_i32_1 = arith.constant 0 : i32
    %c0_i32_2 = arith.constant 0 : i32
    return %arg0, %c0_i32, %c0_i32_0, %c0_i32_1 : i32, i32, i32, i32
  }
  func.func @transform_1(%arg0: i32, %arg1: i32) -> (i32, i32) {
    %c0_i32 = arith.constant 0 : i32
    %c0_i32_0 = arith.constant 0 : i32
    %c0_i32_1 = arith.constant 0 : i32
    return %c0_i32, %c0_i32_0 : i32, i32
  }
  func.func @transform_2(%arg0: i32, %arg1: i32) -> (i32, i32, i32) {
    %c0_i32 = arith.constant 0 : i32
    %c0_i32_0 = arith.constant 0 : i32
    return %arg0, %c0_i32, %arg1 : i32, i32, i32
  }
}

</mosaic_0001>

<llo_original>
// kernel: tpu_custom_call.1
$region0: #{tpu_custom_call.1}
  #allocation0 [shape = 'u32[]', space=smem, size = 0x4, offset = 0x4, fixed_abs, tag = 'smem constant byte address 0x4 - core index']
  #allocation1 [shape = 'u32[72,128]{1,0:T(1,128)}', space=vmem, size = 0x9000, scoped, tag = 'internal scratch']
  #allocation2 [shape = 'bf16[128,36]{1,0:T(8,128)(2,1)}', space=vmem, size = 0x8000, scoped, tag = 'scratch operand']
  %s0 = inlined_call_operand.vmem [shape: bf16[2,18,18,4], index: 0, kind: input, shape index: {}]
  %s1 = inlined_call_operand.vmem [shape: bf16[8,36], index: 1, kind: input, shape index: {}]
  %s2 = inlined_call_operand.hbm [shape: f32[2,8,256], index: 2, kind: output, shape index: {}]
  %s3 = sld [smem:[#allocation0]]
  $region41: #{tpu_custom_call.1} parent=0
    _
  %s5 = ssub.s32 1, %s3
  %s6 = scalar_select 0, %s5, %s3
  $region1: #{tpu_custom_call.1} parent=0
    #allocation3 [shape = 'u8[8192]{0}', space=vmem, size = 0x2000, scoped, tag = 'output window, operand 0']
    #allocation4 [shape = 's32[2]{0}', space=sflag, size = 0x8, scoped, tag = 'scoped memory for tpu_custom_call.1']
    %7 = vsyncpa [#allocation4], 0
    %s8 = scalar_lea.sflag [#allocation4], 1
    %9 = vsyncpa %s8, 0
    loop: start=0, step=1, limit=6
    $region2: #{tpu_custom_call.1} parent=1 // loop_pre_header
      _
    $region3: #{tpu_custom_call.1} parent=1 // loop_header
      %s11 = sphi 0, %s15
      %p12 = scmp.ge.s32.totalorder %s11, 6
      %s18 = sphi 0, %s30
      %s19 = sphi 0, %s26
      %s20 = sphi 0, %s18
      %s21 = sphi 0, %s19
      %s22 = sphi 0, %s20
      %s23 = sphi 0, %s21
      %s33 = sphi 0, %s35
      %s36 = sphi 0, %s33
      %s37 = sphi 0, %s36
      %s53 = sphi 0, %s37
      %s57 = sphi 0, %s57
      %s59 = sphi 0, %s57
      %s60 = sphi 0, %s59
      %s74 = sphi 0, %s60
      %s82 = sphi 0, %s84
      %s85 = sphi 0, %s82
      %s86 = sphi 0, %s85
      %s102 = sphi 0, %s86
    $region4: #{tpu_custom_call.1} parent=1 // loop_header_branch
      %14 = sbr.rel (%p12) target = $region8
    $region5: #{tpu_custom_call.1} parent=1 // loop_body
      %s16 = ssub.s32 %s11, 1
      %s17 = ssub.s32 %s11, 2
      %s24 = sadd.s32 1, %s19
      %p25 = scmp.ge.s32.totalorder %s24, 2
      %s26 = scalar_select %p25, 0, %s24
      %s27 = sadd.s32 1, %s18
      %s28 = scalar_select %p25, %s27, %s18
      %p29 = scmp.ge.s32.totalorder %s28, 2
      %s30 = scalar_select %p29, 0, %s28
      %s31 = ssub.s32 %s18, %s30
      %p32 = scmp.eq.s32.totalorder %s31, 0
      %s34 = sadd.s32 %s33, 1
      %s35 = scalar_select %p32, %s33, %s34
      %p38 = pneg %p32
      %p39 = scmp.eq.s32.totalorder %s11, 3
      %p40 = por %p38, %p39
      %p41 = scmp.ne.s32.totalorder %s33, %s36
      %p42 = scmp.eq.s32.totalorder %s11, 0
      %p43 = por %p41, %p42
      %p44 = scmp.ne.s32.totalorder %s33, %s36
      %p45 = scmp.eq.s32.totalorder %s16, 3
      %p46 = por %p44, %p45
      %p47 = scmp.ne.s32.totalorder %s36, %s37
      %p48 = scmp.eq.s32.totalorder %s16, 0
      %p49 = por %p47, %p48
      %p50 = scmp.ne.s32.totalorder %s36, %s37
      %p51 = scmp.eq.s32.totalorder %s17, 3
      %p52 = por %p50, %p51
      %p54 = scmp.ne.s32.totalorder %s37, %s53
      %p55 = scmp.eq.s32.totalorder %s17, 0
      %p56 = por %p54, %p55
      %s58 = sadd.s32 %s57, 1
      %p61 = scmp.eq.s32.totalorder %s11, 3
      %p62 = scmp.ne.s32.totalorder %s57, %s59
      %p63 = scmp.eq.s32.totalorder %s11, 0
      %p64 = por %p62, %p63
      %p65 = scmp.ne.s32.totalorder %s57, %s59
      %p66 = scmp.eq.s32.totalorder %s16, 3
      %p67 = por %p65, %p66
      %p68 = scmp.ne.s32.totalorder %s59, %s60
      %p69 = scmp.eq.s32.totalorder %s16, 0
      %p70 = por %p68, %p69
      %p71 = scmp.ne.s32.totalorder %s59, %s60
      %p72 = scmp.eq.s32.totalorder %s17, 3
      %p73 = por %p71, %p72
      %p75 = scmp.ne.s32.totalorder %s60, %s74
      %p76 = scmp.eq.s32.totalorder %s17, 0
      %p77 = por %p75, %p76
      %s78 = ssub.s32 %s18, %s30
      %s79 = ssub.s32 %s19, %s26
      %s80 = sor.u32 %s78, %s79
      %p81 = scmp.eq.s32.totalorder %s80, 0
      %s83 = sadd.s32 %s82, 1
      %s84 = scalar_select %p81, %s82, %s83
      %p87 = pneg %p81
      %p88 = scmp.eq.s32.totalorder %s11, 3
      %p89 = por %p87, %p88
      %p90 = scmp.ne.s32.totalorder %s82, %s85
      %p91 = scmp.eq.s32.totalorder %s11, 0
      %p92 = por %p90, %p91
      %p93 = scmp.ne.s32.totalorder %s82, %s85
      %p94 = scmp.eq.s32.totalorder %s16, 3
      %p95 = por %p93, %p94
      %p96 = scmp.ne.s32.totalorder %s85, %s86
      %p97 = scmp.eq.s32.totalorder %s16, 0
      %p98 = por %p96, %p97
      %p99 = scmp.ne.s32.totalorder %s85, %s86
      %p100 = scmp.eq.s32.totalorder %s17, 3
      %p101 = por %p99, %p100
      %p103 = scmp.ne.s32.totalorder %s86, %s102
      %p104 = scmp.eq.s32.totalorder %s17, 0
      %p105 = por %p103, %p104
      %p106 = scmp.le.s32.totalorder 1, %s11
      %p107 = scmp.lt.s32.totalorder %s11, 5
      %p108 = pnand %p106, %p107
      %p109 = pneg %p108
      // Predicated region
      $region9: #{tpu_custom_call.1} parent=5 // pred_check
        _
      $region10: #{tpu_custom_call.1} parent=5 // pred_check_branch
        %111 = sbr.rel (%p108) target = $region12
      $region11: #{tpu_custom_call.1} parent=5 // pred_region
        %s112 = ssub.s32 %s11, 1
        // Predicated region
        $region13: #{tpu_custom_call.1} parent=11 // pred_check
          %p113 = pneg %p70
        $region14: #{tpu_custom_call.1} parent=11 // pred_check_branch
          %115 = sbr.rel (%p113) target = $region16
        $region15: #{tpu_custom_call.1} parent=11 // pred_region
          _
        $region16: #{tpu_custom_call.1} parent=11 // pred_fallthru
          _
      $region12: #{tpu_custom_call.1} parent=5 // pred_fallthru
        _
      %p116 = scmp.lt.s32.totalorder %s11, 4
      // Predicated region
      $region17: #{tpu_custom_call.1} parent=5 // pred_check
        %p117 = pneg %p116
      $region18: #{tpu_custom_call.1} parent=5 // pred_check_branch
        %119 = sbr.rel (%p117) target = $region20
      $region19: #{tpu_custom_call.1} parent=5 // pred_region
        // Predicated region
        $region21: #{tpu_custom_call.1} parent=19 // pred_check
          %p120 = pneg %p43
        $region22: #{tpu_custom_call.1} parent=19 // pred_check_branch
          %122 = sbr.rel (%p120) target = $region24
        $region23: #{tpu_custom_call.1} parent=19 // pred_region
          %p123 = scmp.lt.s32.totalorder %s18, 1
          %s124 = scalar_select %p123, %s18, 1
          %s125 = smul.addr %s124, 54
          %s126 = smul.addr %s125, 4
          %s127 = scalar_lea.vmem %s0, %s126
        $region24: #{tpu_custom_call.1} parent=19 // pred_fallthru
          _
      $region20: #{tpu_custom_call.1} parent=5 // pred_fallthru
        _
      %p128 = scmp.le.s32.totalorder 1, %s11
      %p129 = scmp.lt.s32.totalorder %s11, 5
      %p130 = pnand %p128, %p129
      %p131 = pneg %p130
      // Predicated region
      $region25: #{tpu_custom_call.1} parent=5 // pred_check
        _
      $region26: #{tpu_custom_call.1} parent=5 // pred_check_branch
        %133 = sbr.rel (%p130) target = $region28
      $region27: #{tpu_custom_call.1} parent=5 // pred_region
        %s134 = ssub.s32 %s11, 1
        %p135 = scmp.lt.s32.totalorder %s20, 1
        %s136 = scalar_select %p135, %s20, 1
        %s137 = smul.addr %s136, 54
        %s138 = smul.addr %s137, 4
        %s139 = scalar_lea.vmem %s0, %s138
        %p140 = pneg %p49
        %p141 = pneg %p46
        %p142 = pneg %p70
        %p143 = pneg %p67
        %p144 = pneg %p98
        %p145 = pneg %p95
        %s146 = sand.u32 %s85, 1
        %s147 = scalar_lea.sflag [#allocation4], %s146
        %s148 = sand.u32 %s85, 1
        %s149 = smul.addr %s148, 8
        %s150 = scalar_lea.vmem [#allocation3], %s149
        %p151 = scmp.lt.s32.totalorder %s20, 1
        %s152 = scalar_select %p151, %s20, 1
        %s153 = smul.addr %s152, 54
        %s154 = smul.addr %s153, 4
        %s155 = scalar_lea.vmem %s0, %s154
        %s156 = smul.u32 %s21, 8
        %s157 = smul.u32 %s156, 3
        %s158 = smul.addr %s157, 4
        %s159 = scalar_lea.vmem %s155, %s158
        %v160 = vld [vmem:[%s159] sm:$0xf]
        %v161 = vld [vmem:[%s159 + $0x4] sm:$0xf]
        %v162 = vld [vmem:[%s159 + $0x8] sm:$0x1]
        %v163 = vld [vmem:[%s159 + $0xc] sm:$0xf]
        %v164 = vld [vmem:[%s159 + $0x10] sm:$0xf]
        %v165 = vld [vmem:[%s159 + $0x14] sm:$0x1]
        %v166 = vld [vmem:[%s159 + $0x18] sm:$0xf]
        %v167 = vld [vmem:[%s159 + $0x1c] sm:$0xf]
        %v168 = vld [vmem:[%s159 + $0x20] sm:$0x1]
        %v169 = vld [vmem:[%s159 + $0x24] sm:$0xf]
        %v170 = vld [vmem:[%s159 + $0x28] sm:$0xf]
        %v171 = vld [vmem:[%s159 + $0x2c] sm:$0x1]
        %v172 = vld [vmem:[%s159 + $0x30] sm:$0xf]
        %v173 = vld [vmem:[%s159 + $0x34] sm:$0xf]
        %v174 = vld [vmem:[%s159 + $0x38] sm:$0x1]
        %v175 = vld [vmem:[%s159 + $0x3c] sm:$0xf]
        %v176 = vld [vmem:[%s159 + $0x40] sm:$0xf]
        %v177 = vld [vmem:[%s159 + $0x44] sm:$0x1]
        %v178 = vld [vmem:[%s159 + $0x48] sm:$0xf]
        %v179 = vld [vmem:[%s159 + $0x4c] sm:$0xf]
        %v180 = vld [vmem:[%s159 + $0x50] sm:$0x1]
        %v181 = vld [vmem:[%s159 + $0x54] sm:$0xf]
        %v182 = vld [vmem:[%s159 + $0x58] sm:$0xf]
        %v183 = vld [vmem:[%s159 + $0x5c] sm:$0x1]
        %v184 = vunpack.c.l.bf16 %v160
        %v185 = vunpack.c.l.bf16 %v161
        %v186 = vunpack.c.l.bf16 %v162
        %v187 = vunpack.c.l.bf16 %v163
        %v188 = vunpack.c.l.bf16 %v164
        %v189 = vunpack.c.l.bf16 %v165
        %v190 = vunpack.c.l.bf16 %v166
        %v191 = vunpack.c.l.bf16 %v167
        %v192 = vunpack.c.l.bf16 %v168
        %v193 = vunpack.c.l.bf16 %v169
        %v194 = vunpack.c.l.bf16 %v170
        %v195 = vunpack.c.l.bf16 %v171
        %v196 = vunpack.c.l.bf16 %v172
        %v197 = vunpack.c.l.bf16 %v173
        %v198 = vunpack.c.l.bf16 %v174
        %v199 = vunpack.c.l.bf16 %v175
        %v200 = vunpack.c.l.bf16 %v176
        %v201 = vunpack.c.l.bf16 %v177
        %v202 = vunpack.c.l.bf16 %v178
        %v203 = vunpack.c.l.bf16 %v179
        %v204 = vunpack.c.l.bf16 %v180
        %v205 = vunpack.c.l.bf16 %v181
        %v206 = vunpack.c.l.bf16 %v182
        %v207 = vunpack.c.l.bf16 %v183
        %v208 = vmax.f32 %v184, 0.0
        %v209 = vmax.f32 %v185, 0.0
        %v210 = vmax.f32 %v186, 0.0
        %v211 = vmax.f32 %v187, 0.0
        %v212 = vmax.f32 %v188, 0.0
        %v213 = vmax.f32 %v189, 0.0
        %v214 = vmax.f32 %v190, 0.0
        %v215 = vmax.f32 %v191, 0.0
        %v216 = vmax.f32 %v192, 0.0
        %v217 = vmax.f32 %v193, 0.0
        %v218 = vmax.f32 %v194, 0.0
        %v219 = vmax.f32 %v195, 0.0
        %v220 = vmax.f32 %v196, 0.0
        %v221 = vmax.f32 %v197, 0.0
        %v222 = vmax.f32 %v198, 0.0
        %v223 = vmax.f32 %v199, 0.0
        %v224 = vmax.f32 %v200, 0.0
        %v225 = vmax.f32 %v201, 0.0
        %v226 = vmax.f32 %v202, 0.0
        %v227 = vmax.f32 %v203, 0.0
        %v228 = vmax.f32 %v204, 0.0
        %v229 = vmax.f32 %v205, 0.0
        %v230 = vmax.f32 %v206, 0.0
        %v231 = vmax.f32 %v207, 0.0
        %v232 = vpack.c.bf16 %v208, %v208
        %v233 = vpack.c.bf16 %v209, %v209
        %v234 = vpack.c.bf16 %v210, %v210
        %v235 = vpack.c.bf16 %v211, %v211
        %v236 = vpack.c.bf16 %v212, %v212
        %v237 = vpack.c.bf16 %v213, %v213
        %v238 = vpack.c.bf16 %v214, %v214
        %v239 = vpack.c.bf16 %v215, %v215
        %v240 = vpack.c.bf16 %v216, %v216
        %v241 = vpack.c.bf16 %v217, %v217
        %v242 = vpack.c.bf16 %v218, %v218
        %v243 = vpack.c.bf16 %v219, %v219
        %v244 = vpack.c.bf16 %v220, %v220
        %v245 = vpack.c.bf16 %v221, %v221
        %v246 = vpack.c.bf16 %v222, %v222
        %v247 = vpack.c.bf16 %v223, %v223
        %v248 = vpack.c.bf16 %v224, %v224
        %v249 = vpack.c.bf16 %v225, %v225
        %v250 = vpack.c.bf16 %v226, %v226
        %v251 = vpack.c.bf16 %v227, %v227
        %v252 = vpack.c.bf16 %v228, %v228
        %v253 = vpack.c.bf16 %v229, %v229
        %v254 = vpack.c.bf16 %v230, %v230
        %v255 = vpack.c.bf16 %v231, %v231
        %vm256 = vcmask 27648
        %257 = vst.msk [vmem:[#allocation2] sm:$0xf] %vm256, %v232
        %258 = vst.msk [vmem:[#allocation2 + $0x4] sm:$0xf] %vm256, %v233
        %259 = vst.msk [vmem:[#allocation2 + $0x8] sm:$0xf] %vm256, %v235
        %260 = vst.msk [vmem:[#allocation2 + $0xc] sm:$0xf] %vm256, %v236
        %261 = vst.msk [vmem:[#allocation2 + $0x10] sm:$0xf] %vm256, %v238
        %262 = vst.msk [vmem:[#allocation2 + $0x14] sm:$0xf] %vm256, %v239
        %263 = vst.msk [vmem:[#allocation2 + $0x18] sm:$0xf] %vm256, %v241
        %264 = vst.msk [vmem:[#allocation2 + $0x1c] sm:$0xf] %vm256, %v242
        %265 = vst.msk [vmem:[#allocation2 + $0x20] sm:$0xf] %vm256, %v244
        %266 = vst.msk [vmem:[#allocation2 + $0x24] sm:$0xf] %vm256, %v245
        %267 = vst.msk [vmem:[#allocation2 + $0x28] sm:$0xf] %vm256, %v247
        %268 = vst.msk [vmem:[#allocation2 + $0x2c] sm:$0xf] %vm256, %v248
        %269 = vst.msk [vmem:[#allocation2 + $0x30] sm:$0xf] %vm256, %v250
        %270 = vst.msk [vmem:[#allocation2 + $0x34] sm:$0xf] %vm256, %v251
        %271 = vst.msk [vmem:[#allocation2 + $0x38] sm:$0xf] %vm256, %v253
        %272 = vst.msk [vmem:[#allocation2 + $0x3c] sm:$0xf] %vm256, %v254
        %vm273 = vsmask.f32 3328
        %vm274 = vsmask.f32 7440
        %vm275 = vmor %vm273, %vm274
        %v277 = vshrl.u32 %v232, 16
        %v279 = vrot.slane %v277, 4
        %v280 = vshll.u32 %v232, 16
        %v282 = vrot.slane %v280, 5
        %v283 = vor.u32 %v279, %v282
        %v284 = vrot.slane %v283, 4
        %v286 = vshll.u32 %v233, 16
        %v288 = vrot.slane %v286, 5
        %v289 = vsel %vm275, %v284, %v288
        %v290 = vshrl.u32 %v233, 16
        %v292 = vrot.slane %v290, 4
        %v293 = vor.u32 %v292, %v288
        %v294 = vrot.slane %v293, 4
        %v296 = vshll.u32 %v234, 16
        %v298 = vrot.slane %v296, 5
        %v299 = vsel %vm275, %v294, %v298
        %v301 = vshrl.u32 %v235, 16
        %v303 = vrot.slane %v301, 4
        %v304 = vshll.u32 %v235, 16
        %v306 = vrot.slane %v304, 5
        %v307 = vor.u32 %v303, %v306
        %v308 = vrot.slane %v307, 4
        %v310 = vshll.u32 %v236, 16
        %v312 = vrot.slane %v310, 5
        %v313 = vsel %vm275, %v308, %v312
        %v314 = vshrl.u32 %v236, 16
        %v316 = vrot.slane %v314, 4
        %v317 = vor.u32 %v316, %v312
        %v318 = vrot.slane %v317, 4
        %v320 = vshll.u32 %v237, 16
        %v322 = vrot.slane %v320, 5
        %v323 = vsel %vm275, %v318, %v322
        %v325 = vshrl.u32 %v238, 16
        %v327 = vrot.slane %v325, 4
        %v328 = vshll.u32 %v238, 16
        %v330 = vrot.slane %v328, 5
        %v331 = vor.u32 %v327, %v330
        %v332 = vrot.slane %v331, 4
        %v334 = vshll.u32 %v239, 16
        %v336 = vrot.slane %v334, 5
        %v337 = vsel %vm275, %v332, %v336
        %v338 = vshrl.u32 %v239, 16
        %v340 = vrot.slane %v338, 4
        %v341 = vor.u32 %v340, %v336
        %v342 = vrot.slane %v341, 4
        %v344 = vshll.u32 %v240, 16
        %v346 = vrot.slane %v344, 5
        %v347 = vsel %vm275, %v342, %v346
        %v349 = vshrl.u32 %v241, 16
        %v351 = vrot.slane %v349, 4
        %v352 = vshll.u32 %v241, 16
        %v354 = vrot.slane %v352, 5
        %v355 = vor.u32 %v351, %v354
        %v356 = vrot.slane %v355, 4
        %v358 = vshll.u32 %v242, 16
        %v360 = vrot.slane %v358, 5
        %v361 = vsel %vm275, %v356, %v360
        %v362 = vshrl.u32 %v242, 16
        %v364 = vrot.slane %v362, 4
        %v365 = vor.u32 %v364, %v360
        %v366 = vrot.slane %v365, 4
        %v368 = vshll.u32 %v243, 16
        %v370 = vrot.slane %v368, 5
        %v371 = vsel %vm275, %v366, %v370
        %v373 = vshrl.u32 %v244, 16
        %v375 = vrot.slane %v373, 4
        %v376 = vshll.u32 %v244, 16
        %v378 = vrot.slane %v376, 5
        %v379 = vor.u32 %v375, %v378
        %v380 = vrot.slane %v379, 4
        %v382 = vshll.u32 %v245, 16
        %v384 = vrot.slane %v382, 5
        %v385 = vsel %vm275, %v380, %v384
        %v386 = vshrl.u32 %v245, 16
        %v388 = vrot.slane %v386, 4
        %v389 = vor.u32 %v388, %v384
        %v390 = vrot.slane %v389, 4
        %v392 = vshll.u32 %v246, 16
        %v394 = vrot.slane %v392, 5
        %v395 = vsel %vm275, %v390, %v394
        %v397 = vshrl.u32 %v247, 16
        %v399 = vrot.slane %v397, 4
        %v400 = vshll.u32 %v247, 16
        %v402 = vrot.slane %v400, 5
        %v403 = vor.u32 %v399, %v402
        %v404 = vrot.slane %v403, 4
        %v406 = vshll.u32 %v248, 16
        %v408 = vrot.slane %v406, 5
        %v409 = vsel %vm275, %v404, %v408
        %v410 = vshrl.u32 %v248, 16
        %v412 = vrot.slane %v410, 4
        %v413 = vor.u32 %v412, %v408
        %v414 = vrot.slane %v413, 4
        %v416 = vshll.u32 %v249, 16
        %v418 = vrot.slane %v416, 5
        %v419 = vsel %vm275, %v414, %v418
        %v421 = vshrl.u32 %v250, 16
        %v423 = vrot.slane %v421, 4
        %v424 = vshll.u32 %v250, 16
        %v426 = vrot.slane %v424, 5
        %v427 = vor.u32 %v423, %v426
        %v428 = vrot.slane %v427, 4
        %v430 = vshll.u32 %v251, 16
        %v432 = vrot.slane %v430, 5
        %v433 = vsel %vm275, %v428, %v432
        %v434 = vshrl.u32 %v251, 16
        %v436 = vrot.slane %v434, 4
        %v437 = vor.u32 %v436, %v432
        %v438 = vrot.slane %v437, 4
        %v440 = vshll.u32 %v252, 16
        %v442 = vrot.slane %v440, 5
        %v443 = vsel %vm275, %v438, %v442
        %v445 = vshrl.u32 %v253, 16
        %v447 = vrot.slane %v445, 4
        %v448 = vshll.u32 %v253, 16
        %v450 = vrot.slane %v448, 5
        %v451 = vor.u32 %v447, %v450
        %v452 = vrot.slane %v451, 4
        %v454 = vshll.u32 %v254, 16
        %v456 = vrot.slane %v454, 5
        %v457 = vsel %vm275, %v452, %v456
        %v458 = vshrl.u32 %v254, 16
        %v460 = vrot.slane %v458, 4
        %v461 = vor.u32 %v460, %v456
        %v462 = vrot.slane %v461, 4
        %v464 = vshll.u32 %v255, 16
        %v466 = vrot.slane %v464, 5
        %v467 = vsel %vm275, %v462, %v466
        %468 = vrot.lane.b32.xlu0 %v289, 4
        %v469 = vpop.permute.xlu0 %468
        %470 = vrot.lane.b32.xlu0 %v299, 4
        %v471 = vpop.permute.xlu0 %470
        %472 = vrot.lane.b32.xlu0 %v313, 4
        %v473 = vpop.permute.xlu0 %472
        %474 = vrot.lane.b32.xlu0 %v323, 4
        %v475 = vpop.permute.xlu0 %474
        %476 = vrot.lane.b32.xlu0 %v337, 4
        %v477 = vpop.permute.xlu0 %476
        %478 = vrot.lane.b32.xlu0 %v347, 4
        %v479 = vpop.permute.xlu0 %478
        %480 = vrot.lane.b32.xlu0 %v361, 4
        %v481 = vpop.permute.xlu0 %480
        %482 = vrot.lane.b32.xlu0 %v371, 4
        %v483 = vpop.permute.xlu0 %482
        %484 = vrot.lane.b32.xlu0 %v385, 4
        %v485 = vpop.permute.xlu0 %484
        %486 = vrot.lane.b32.xlu0 %v395, 4
        %v487 = vpop.permute.xlu0 %486
        %488 = vrot.lane.b32.xlu0 %v409, 4
        %v489 = vpop.permute.xlu0 %488
        %490 = vrot.lane.b32.xlu0 %v419, 4
        %v491 = vpop.permute.xlu0 %490
        %492 = vrot.lane.b32.xlu0 %v433, 4
        %v493 = vpop.permute.xlu0 %492
        %494 = vrot.lane.b32.xlu0 %v443, 4
        %v495 = vpop.permute.xlu0 %494
        %496 = vrot.lane.b32.xlu0 %v457, 4
        %v497 = vpop.permute.xlu0 %496
        %498 = vrot.lane.b32.xlu0 %v467, 4
        %v499 = vpop.permute.xlu0 %498
        %vm516 = vcmask 60448
        %517 = vst.msk [vmem:[#allocation2] sm:$0xf] %vm516, %v469
        %518 = vst.msk [vmem:[#allocation2 + $0x4] sm:$0xf] %vm516, %v471
        %519 = vst.msk [vmem:[#allocation2 + $0x8] sm:$0xf] %vm516, %v473
        %520 = vst.msk [vmem:[#allocation2 + $0xc] sm:$0xf] %vm516, %v475
        %521 = vst.msk [vmem:[#allocation2 + $0x10] sm:$0xf] %vm516, %v477
        %522 = vst.msk [vmem:[#allocation2 + $0x14] sm:$0xf] %vm516, %v479
        %523 = vst.msk [vmem:[#allocation2 + $0x18] sm:$0xf] %vm516, %v481
        %524 = vst.msk [vmem:[#allocation2 + $0x1c] sm:$0xf] %vm516, %v483
        %525 = vst.msk [vmem:[#allocation2 + $0x20] sm:$0xf] %vm516, %v485
        %526 = vst.msk [vmem:[#allocation2 + $0x24] sm:$0xf] %vm516, %v487
        %527 = vst.msk [vmem:[#allocation2 + $0x28] sm:$0xf] %vm516, %v489
        %528 = vst.msk [vmem:[#allocation2 + $0x2c] sm:$0xf] %vm516, %v491
        %529 = vst.msk [vmem:[#allocation2 + $0x30] sm:$0xf] %vm516, %v493
        %530 = vst.msk [vmem:[#allocation2 + $0x34] sm:$0xf] %vm516, %v495
        %531 = vst.msk [vmem:[#allocation2 + $0x38] sm:$0xf] %vm516, %v497
        %532 = vst.msk [vmem:[#allocation2 + $0x3c] sm:$0xf] %vm516, %v499
        %vm557 = vcmask 1042432
        %vm558 = vcmask 1046532
        %vm559 = vmor %vm557, %vm558
        %v560 = vrot.slane %v232, 5
        %v561 = vrot.slane %v560, 4
        %v562 = vrot.slane %v233, 5
        %v563 = vsel %vm559, %v561, %v562
        %v564 = vrot.slane %v562, 4
        %v565 = vrot.slane %v234, 5
        %v566 = vsel %vm559, %v564, %v565
        %v567 = vrot.slane %v235, 5
        %v568 = vrot.slane %v567, 4
        %v569 = vrot.slane %v236, 5
        %v570 = vsel %vm559, %v568, %v569
        %v571 = vrot.slane %v569, 4
        %v572 = vrot.slane %v237, 5
        %v573 = vsel %vm559, %v571, %v572
        %v574 = vrot.slane %v238, 5
        %v575 = vrot.slane %v574, 4
        %v576 = vrot.slane %v239, 5
        %v577 = vsel %vm559, %v575, %v576
        %v578 = vrot.slane %v576, 4
        %v579 = vrot.slane %v240, 5
        %v580 = vsel %vm559, %v578, %v579
        %v581 = vrot.slane %v241, 5
        %v582 = vrot.slane %v581, 4
        %v583 = vrot.slane %v242, 5
        %v584 = vsel %vm559, %v582, %v583
        %v585 = vrot.slane %v583, 4
        %v586 = vrot.slane %v243, 5
        %v587 = vsel %vm559, %v585, %v586
        %v588 = vrot.slane %v244, 5
        %v589 = vrot.slane %v588, 4
        %v590 = vrot.slane %v245, 5
        %v591 = vsel %vm559, %v589, %v590
        %v592 = vrot.slane %v590, 4
        %v593 = vrot.slane %v246, 5
        %v594 = vsel %vm559, %v592, %v593
        %v595 = vrot.slane %v247, 5
        %v596 = vrot.slane %v595, 4
        %v597 = vrot.slane %v248, 5
        %v598 = vsel %vm559, %v596, %v597
        %v599 = vrot.slane %v597, 4
        %v600 = vrot.slane %v249, 5
        %v601 = vsel %vm559, %v599, %v600
        %v602 = vrot.slane %v250, 5
        %v603 = vrot.slane %v602, 4
        %v604 = vrot.slane %v251, 5
        %v605 = vsel %vm559, %v603, %v604
        %v606 = vrot.slane %v604, 4
        %v607 = vrot.slane %v252, 5
        %v608 = vsel %vm559, %v606, %v607
        %v609 = vrot.slane %v253, 5
        %v610 = vrot.slane %v609, 4
        %v611 = vrot.slane %v254, 5
        %v612 = vsel %vm559, %v610, %v611
        %v613 = vrot.slane %v611, 4
        %v614 = vrot.slane %v255, 5
        %v615 = vsel %vm559, %v613, %v614
        %616 = vrot.lane.b32.xlu0 %v563, 8
        %v617 = vpop.permute.xlu0 %616
        %618 = vrot.lane.b32.xlu0 %v566, 8
        %v619 = vpop.permute.xlu0 %618
        %620 = vrot.lane.b32.xlu0 %v570, 8
        %v621 = vpop.permute.xlu0 %620
        %622 = vrot.lane.b32.xlu0 %v573, 8
        %v623 = vpop.permute.xlu0 %622
        %624 = vrot.lane.b32.xlu0 %v577, 8
        %v625 = vpop.permute.xlu0 %624
        %626 = vrot.lane.b32.xlu0 %v580, 8
        %v627 = vpop.permute.xlu0 %626
        %628 = vrot.lane.b32.xlu0 %v584, 8
        %v629 = vpop.permute.xlu0 %628
        %630 = vrot.lane.b32.xlu0 %v587, 8
        %v631 = vpop.permute.xlu0 %630
        %632 = vrot.lane.b32.xlu0 %v591, 8
        %v633 = vpop.permute.xlu0 %632
        %634 = vrot.lane.b32.xlu0 %v594, 8
        %v635 = vpop.permute.xlu0 %634
        %636 = vrot.lane.b32.xlu0 %v598, 8
        %v637 = vpop.permute.xlu0 %636
        %638 = vrot.lane.b32.xlu0 %v601, 8
        %v639 = vpop.permute.xlu0 %638
        %640 = vrot.lane.b32.xlu0 %v605, 8
        %v641 = vpop.permute.xlu0 %640
        %642 = vrot.lane.b32.xlu0 %v608, 8
        %v643 = vpop.permute.xlu0 %642
        %644 = vrot.lane.b32.xlu0 %v612, 8
        %v645 = vpop.permute.xlu0 %644
        %646 = vrot.lane.b32.xlu0 %v615, 8
        %v647 = vpop.permute.xlu0 %646
        %vm664 = vcmask 93248
        %665 = vst.msk [vmem:[#allocation2] sm:$0xf] %vm664, %v617
        %666 = vst.msk [vmem:[#allocation2 + $0x4] sm:$0xf] %vm664, %v619
        %667 = vst.msk [vmem:[#allocation2 + $0x8] sm:$0xf] %vm664, %v621
        %668 = vst.msk [vmem:[#allocation2 + $0xc] sm:$0xf] %vm664, %v623
        %669 = vst.msk [vmem:[#allocation2 + $0x10] sm:$0xf] %vm664, %v625
        %670 = vst.msk [vmem:[#allocation2 + $0x14] sm:$0xf] %vm664, %v627
        %671 = vst.msk [vmem:[#allocation2 + $0x18] sm:$0xf] %vm664, %v629
        %672 = vst.msk [vmem:[#allocation2 + $0x1c] sm:$0xf] %vm664, %v631
        %673 = vst.msk [vmem:[#allocation2 + $0x20] sm:$0xf] %vm664, %v633
        %674 = vst.msk [vmem:[#allocation2 + $0x24] sm:$0xf] %vm664, %v635
        %675 = vst.msk [vmem:[#allocation2 + $0x28] sm:$0xf] %vm664, %v637
        %676 = vst.msk [vmem:[#allocation2 + $0x2c] sm:$0xf] %vm664, %v639
        %677 = vst.msk [vmem:[#allocation2 + $0x30] sm:$0xf] %vm664, %v641
        %678 = vst.msk [vmem:[#allocation2 + $0x34] sm:$0xf] %vm664, %v643
        %679 = vst.msk [vmem:[#allocation2 + $0x38] sm:$0xf] %vm664, %v645
        %680 = vst.msk [vmem:[#allocation2 + $0x3c] sm:$0xf] %vm664, %v647
        %s681 = sadd.s32 %s156, 1
        %s682 = smul.u32 %s681, 3
        %s683 = smul.addr %s682, 4
        %s684 = scalar_lea.vmem %s155, %s683
        %v685 = vld [vmem:[%s684] sm:$0xf]
        %v686 = vld [vmem:[%s684 + $0x4] sm:$0xf]
        %v687 = vld [vmem:[%s684 + $0x8] sm:$0x1]
        %v688 = vld [vmem:[%s684 + $0xc] sm:$0xf]
        %v689 = vld [vmem:[%s684 + $0x10] sm:$0xf]
        %v690 = vld [vmem:[%s684 + $0x14] sm:$0x1]
        %v691 = vld [vmem:[%s684 + $0x18] sm:$0xf]
        %v692 = vld [vmem:[%s684 + $0x1c] sm:$0xf]
        %v693 = vld [vmem:[%s684 + $0x20] sm:$0x1]
        %v694 = vld [vmem:[%s684 + $0x24] sm:$0xf]
        %v695 = vld [vmem:[%s684 + $0x28] sm:$0xf]
        %v696 = vld [vmem:[%s684 + $0x2c] sm:$0x1]
        %v697 = vld [vmem:[%s684 + $0x30] sm:$0xf]
        %v698 = vld [vmem:[%s684 + $0x34] sm:$0xf]
        %v699 = vld [vmem:[%s684 + $0x38] sm:$0x1]
        %v700 = vld [vmem:[%s684 + $0x3c] sm:$0xf]
        %v701 = vld [vmem:[%s684 + $0x40] sm:$0xf]
        %v702 = vld [vmem:[%s684 + $0x44] sm:$0x1]
        %v703 = vld [vmem:[%s684 + $0x48] sm:$0xf]
        %v704 = vld [vmem:[%s684 + $0x4c] sm:$0xf]
        %v705 = vld [vmem:[%s684 + $0x50] sm:$0x1]
        %v706 = vld [vmem:[%s684 + $0x54] sm:$0xf]
        %v707 = vld [vmem:[%s684 + $0x58] sm:$0xf]
        %v708 = vld [vmem:[%s684 + $0x5c] sm:$0x1]
        %v709 = vunpack.c.l.bf16 %v685
        %v710 = vunpack.c.l.bf16 %v686
        %v711 = vunpack.c.l.bf16 %v687
        %v712 = vunpack.c.l.bf16 %v688
        %v713 = vunpack.c.l.bf16 %v689
        %v714 = vunpack.c.l.bf16 %v690
        %v715 = vunpack.c.l.bf16 %v691
        %v716 = vunpack.c.l.bf16 %v692
        %v717 = vunpack.c.l.bf16 %v693
        %v718 = vunpack.c.l.bf16 %v694
        %v719 = vunpack.c.l.bf16 %v695
        %v720 = vunpack.c.l.bf16 %v696
        %v721 = vunpack.c.l.bf16 %v697
        %v722 = vunpack.c.l.bf16 %v698
        %v723 = vunpack.c.l.bf16 %v699
        %v724 = vunpack.c.l.bf16 %v700
        %v725 = vunpack.c.l.bf16 %v701
        %v726 = vunpack.c.l.bf16 %v702
        %v727 = vunpack.c.l.bf16 %v703
        %v728 = vunpack.c.l.bf16 %v704
        %v729 = vunpack.c.l.bf16 %v705
        %v730 = vunpack.c.l.bf16 %v706
        %v731 = vunpack.c.l.bf16 %v707
        %v732 = vunpack.c.l.bf16 %v708
        %v733 = vmax.f32 %v709, 0.0
        %v734 = vmax.f32 %v710, 0.0
        %v735 = vmax.f32 %v711, 0.0
        %v736 = vmax.f32 %v712, 0.0
        %v737 = vmax.f32 %v713, 0.0
        %v738 = vmax.f32 %v714, 0.0
        %v739 = vmax.f32 %v715, 0.0
        %v740 = vmax.f32 %v716, 0.0
        %v741 = vmax.f32 %v717, 0.0
        %v742 = vmax.f32 %v718, 0.0
        %v743 = vmax.f32 %v719, 0.0
        %v744 = vmax.f32 %v720, 0.0
        %v745 = vmax.f32 %v721, 0.0
        %v746 = vmax.f32 %v722, 0.0
        %v747 = vmax.f32 %v723, 0.0
        %v748 = vmax.f32 %v724, 0.0
        %v749 = vmax.f32 %v725, 0.0
        %v750 = vmax.f32 %v726, 0.0
        %v751 = vmax.f32 %v727, 0.0
        %v752 = vmax.f32 %v728, 0.0
        %v753 = vmax.f32 %v729, 0.0
        %v754 = vmax.f32 %v730, 0.0
        %v755 = vmax.f32 %v731, 0.0
        %v756 = vmax.f32 %v732, 0.0
        %v757 = vpack.c.bf16 %v733, %v733
        %v758 = vpack.c.bf16 %v734, %v734
        %v759 = vpack.c.bf16 %v735, %v735
        %v760 = vpack.c.bf16 %v736, %v736
        %v761 = vpack.c.bf16 %v737, %v737
        %v762 = vpack.c.bf16 %v738, %v738
        %v763 = vpack.c.bf16 %v739, %v739
        %v764 = vpack.c.bf16 %v740, %v740
        %v765 = vpack.c.bf16 %v741, %v741
        %v766 = vpack.c.bf16 %v742, %v742
        %v767 = vpack.c.bf16 %v743, %v743
        %v768 = vpack.c.bf16 %v744, %v744
        %v769 = vpack.c.bf16 %v745, %v745
        %v770 = vpack.c.bf16 %v746, %v746
        %v771 = vpack.c.bf16 %v747, %v747
        %v772 = vpack.c.bf16 %v748, %v748
        %v773 = vpack.c.bf16 %v749, %v749
        %v774 = vpack.c.bf16 %v750, %v750
        %v775 = vpack.c.bf16 %v751, %v751
        %v776 = vpack.c.bf16 %v752, %v752
        %v777 = vpack.c.bf16 %v753, %v753
        %v778 = vpack.c.bf16 %v754, %v754
        %v779 = vpack.c.bf16 %v755, %v755
        %v780 = vpack.c.bf16 %v756, %v756
        %797 = vrot.lane.b32.xlu0 %v757, 12
        %v798 = vpop.permute.xlu0 %797
        %799 = vrot.lane.b32.xlu0 %v758, 12
        %v800 = vpop.permute.xlu0 %799
        %801 = vrot.lane.b32.xlu0 %v760, 12
        %v802 = vpop.permute.xlu0 %801
        %803 = vrot.lane.b32.xlu0 %v761, 12
        %v804 = vpop.permute.xlu0 %803
        %805 = vrot.lane.b32.xlu0 %v763, 12
        %v806 = vpop.permute.xlu0 %805
        %807 = vrot.lane.b32.xlu0 %v764, 12
        %v808 = vpop.permute.xlu0 %807
        %809 = vrot.lane.b32.xlu0 %v766, 12
        %v810 = vpop.permute.xlu0 %809
        %811 = vrot.lane.b32.xlu0 %v767, 12
        %v812 = vpop.permute.xlu0 %811
        %813 = vrot.lane.b32.xlu0 %v769, 12
        %v814 = vpop.permute.xlu0 %813
        %815 = vrot.lane.b32.xlu0 %v770, 12
        %v816 = vpop.permute.xlu0 %815
        %817 = vrot.lane.b32.xlu0 %v772, 12
        %v818 = vpop.permute.xlu0 %817
        %819 = vrot.lane.b32.xlu0 %v773, 12
        %v820 = vpop.permute.xlu0 %819
        %821 = vrot.lane.b32.xlu0 %v775, 12
        %v822 = vpop.permute.xlu0 %821
        %823 = vrot.lane.b32.xlu0 %v776, 12
        %v824 = vpop.permute.xlu0 %823
        %825 = vrot.lane.b32.xlu0 %v778, 12
        %v826 = vpop.permute.xlu0 %825
        %827 = vrot.lane.b32.xlu0 %v779, 12
        %v828 = vpop.permute.xlu0 %827
        %vm845 = vcmask 126048
        %846 = vst.msk [vmem:[#allocation2] sm:$0xf] %vm845, %v798
        %847 = vst.msk [vmem:[#allocation2 + $0x4] sm:$0xf] %vm845, %v800
        %848 = vst.msk [vmem:[#allocation2 + $0x8] sm:$0xf] %vm845, %v802
        %849 = vst.msk [vmem:[#allocation2 + $0xc] sm:$0xf] %vm845, %v804
        %850 = vst.msk [vmem:[#allocation2 + $0x10] sm:$0xf] %vm845, %v806
        %851 = vst.msk [vmem:[#allocation2 + $0x14] sm:$0xf] %vm845, %v808
        %852 = vst.msk [vmem:[#allocation2 + $0x18] sm:$0xf] %vm845, %v810
        %853 = vst.msk [vmem:[#allocation2 + $0x1c] sm:$0xf] %vm845, %v812
        %854 = vst.msk [vmem:[#allocation2 + $0x20] sm:$0xf] %vm845, %v814
        %855 = vst.msk [vmem:[#allocation2 + $0x24] sm:$0xf] %vm845, %v816
        %856 = vst.msk [vmem:[#allocation2 + $0x28] sm:$0xf] %vm845, %v818
        %857 = vst.msk [vmem:[#allocation2 + $0x2c] sm:$0xf] %vm845, %v820
        %858 = vst.msk [vmem:[#allocation2 + $0x30] sm:$0xf] %vm845, %v822
        %859 = vst.msk [vmem:[#allocation2 + $0x34] sm:$0xf] %vm845, %v824
        %860 = vst.msk [vmem:[#allocation2 + $0x38] sm:$0xf] %vm845, %v826
        %861 = vst.msk [vmem:[#allocation2 + $0x3c] sm:$0xf] %vm845, %v828
        %v863 = vshrl.u32 %v757, 16
        %v865 = vrot.slane %v863, 4
        %v866 = vshll.u32 %v757, 16
        %v868 = vrot.slane %v866, 5
        %v869 = vor.u32 %v865, %v868
        %v870 = vrot.slane %v869, 4
        %v872 = vshll.u32 %v758, 16
        %v874 = vrot.slane %v872, 5
        %v875 = vsel %vm275, %v870, %v874
        %v876 = vshrl.u32 %v758, 16
        %v878 = vrot.slane %v876, 4
        %v879 = vor.u32 %v878, %v874
        %v880 = vrot.slane %v879, 4
        %v882 = vshll.u32 %v759, 16
        %v884 = vrot.slane %v882, 5
        %v885 = vsel %vm275, %v880, %v884
        %v887 = vshrl.u32 %v760, 16
        %v889 = vrot.slane %v887, 4
        %v890 = vshll.u32 %v760, 16
        %v892 = vrot.slane %v890, 5
        %v893 = vor.u32 %v889, %v892
        %v894 = vrot.slane %v893, 4
        %v896 = vshll.u32 %v761, 16
        %v898 = vrot.slane %v896, 5
        %v899 = vsel %vm275, %v894, %v898
        %v900 = vshrl.u32 %v761, 16
        %v902 = vrot.slane %v900, 4
        %v903 = vor.u32 %v902, %v898
        %v904 = vrot.slane %v903, 4
        %v906 = vshll.u32 %v762, 16
        %v908 = vrot.slane %v906, 5
        %v909 = vsel %vm275, %v904, %v908
        %v911 = vshrl.u32 %v763, 16
        %v913 = vrot.slane %v911, 4
        %v914 = vshll.u32 %v763, 16
        %v916 = vrot.slane %v914, 5
        %v917 = vor.u32 %v913, %v916
        %v918 = vrot.slane %v917, 4
        %v920 = vshll.u32 %v764, 16
        %v922 = vrot.slane %v920, 5
        %v923 = vsel %vm275, %v918, %v922
        %v924 = vshrl.u32 %v764, 16
        %v926 = vrot.slane %v924, 4
        %v927 = vor.u32 %v926, %v922
        %v928 = vrot.slane %v927, 4
        %v930 = vshll.u32 %v765, 16
        %v932 = vrot.slane %v930, 5
        %v933 = vsel %vm275, %v928, %v932
        %v935 = vshrl.u32 %v766, 16
        %v937 = vrot.slane %v935, 4
        %v938 = vshll.u32 %v766, 16
        %v940 = vrot.slane %v938, 5
        %v941 = vor.u32 %v937, %v940
        %v942 = vrot.slane %v941, 4
        %v944 = vshll.u32 %v767, 16
        %v946 = vrot.slane %v944, 5
        %v947 = vsel %vm275, %v942, %v946
        %v948 = vshrl.u32 %v767, 16
        %v950 = vrot.slane %v948, 4
        %v951 = vor.u32 %v950, %v946
        %v952 = vrot.slane %v951, 4
        %v954 = vshll.u32 %v768, 16
        %v956 = vrot.slane %v954, 5
        %v957 = vsel %vm275, %v952, %v956
        %v959 = vshrl.u32 %v769, 16
        %v961 = vrot.slane %v959, 4
        %v962 = vshll.u32 %v769, 16
        %v964 = vrot.slane %v962, 5
        %v965 = vor.u32 %v961, %v964
        %v966 = vrot.slane %v965, 4
        %v968 = vshll.u32 %v770, 16
        %v970 = vrot.slane %v968, 5
        %v971 = vsel %vm275, %v966, %v970
        %v972 = vshrl.u32 %v770, 16
        %v974 = vrot.slane %v972, 4
        %v975 = vor.u32 %v974, %v970
        %v976 = vrot.slane %v975, 4
        %v978 = vshll.u32 %v771, 16
        %v980 = vrot.slane %v978, 5
        %v981 = vsel %vm275, %v976, %v980
        %v983 = vshrl.u32 %v772, 16
        %v985 = vrot.slane %v983, 4
        %v986 = vshll.u32 %v772, 16
        %v988 = vrot.slane %v986, 5
        %v989 = vor.u32 %v985, %v988
        %v990 = vrot.slane %v989, 4
        %v992 = vshll.u32 %v773, 16
        %v994 = vrot.slane %v992, 5
        %v995 = vsel %vm275, %v990, %v994
        %v996 = vshrl.u32 %v773, 16
        %v998 = vrot.slane %v996, 4
        %v999 = vor.u32 %v998, %v994
        %v1000 = vrot.slane %v999, 4
        %v1002 = vshll.u32 %v774, 16
        %v1004 = vrot.slane %v1002, 5
        %v1005 = vsel %vm275, %v1000, %v1004
        %v1007 = vshrl.u32 %v775, 16
        %v1009 = vrot.slane %v1007, 4
        %v1010 = vshll.u32 %v775, 16
        %v1012 = vrot.slane %v1010, 5
        %v1013 = vor.u32 %v1009, %v1012
        %v1014 = vrot.slane %v1013, 4
        %v1016 = vshll.u32 %v776, 16
        %v1018 = vrot.slane %v1016, 5
        %v1019 = vsel %vm275, %v1014, %v1018
        %v1020 = vshrl.u32 %v776, 16
        %v1022 = vrot.slane %v1020, 4
        %v1023 = vor.u32 %v1022, %v1018
        %v1024 = vrot.slane %v1023, 4
        %v1026 = vshll.u32 %v777, 16
        %v1028 = vrot.slane %v1026, 5
        %v1029 = vsel %vm275, %v1024, %v1028
        %v1031 = vshrl.u32 %v778, 16
        %v1033 = vrot.slane %v1031, 4
        %v1034 = vshll.u32 %v778, 16
        %v1036 = vrot.slane %v1034, 5
        %v1037 = vor.u32 %v1033, %v1036
        %v1038 = vrot.slane %v1037, 4
        %v1040 = vshll.u32 %v779, 16
        %v1042 = vrot.slane %v1040, 5
        %v1043 = vsel %vm275, %v1038, %v1042
        %v1044 = vshrl.u32 %v779, 16
        %v1046 = vrot.slane %v1044, 4
        %v1047 = vor.u32 %v1046, %v1042
        %v1048 = vrot.slane %v1047, 4
        %v1050 = vshll.u32 %v780, 16
        %v1052 = vrot.slane %v1050, 5
        %v1053 = vsel %vm275, %v1048, %v1052
        %1054 = vrot.lane.b32.xlu0 %v875, 16
        %v1055 = vpop.permute.xlu0 %1054
        %1056 = vrot.lane.b32.xlu0 %v885, 16
        %v1057 = vpop.permute.xlu0 %1056
        %1058 = vrot.lane.b32.xlu0 %v899, 16
        %v1059 = vpop.permute.xlu0 %1058
        %1060 = vrot.lane.b32.xlu0 %v909, 16
        %v1061 = vpop.permute.xlu0 %1060
        %1062 = vrot.lane.b32.xlu0 %v923, 16
        %v1063 = vpop.permute.xlu0 %1062
        %1064 = vrot.lane.b32.xlu0 %v933, 16
        %v1065 = vpop.permute.xlu0 %1064
        %1066 = vrot.lane.b32.xlu0 %v947, 16
        %v1067 = vpop.permute.xlu0 %1066
        %1068 = vrot.lane.b32.xlu0 %v957, 16
        %v1069 = vpop.permute.xlu0 %1068
        %1070 = vrot.lane.b32.xlu0 %v971, 16
        %v1071 = vpop.permute.xlu0 %1070
        %1072 = vrot.lane.b32.xlu0 %v981, 16
        %v1073 = vpop.permute.xlu0 %1072
        %1074 = vrot.lane.b32.xlu0 %v995, 16
        %v1075 = vpop.permute.xlu0 %1074
        %1076 = vrot.lane.b32.xlu0 %v1005, 16
        %v1077 = vpop.permute.xlu0 %1076
        %1078 = vrot.lane.b32.xlu0 %v1019, 16
        %v1079 = vpop.permute.xlu0 %1078
        %1080 = vrot.lane.b32.xlu0 %v1029, 16
        %v1081 = vpop.permute.xlu0 %1080
        %1082 = vrot.lane.b32.xlu0 %v1043, 16
        %v1083 = vpop.permute.xlu0 %1082
        %1084 = vrot.lane.b32.xlu0 %v1053, 16
        %v1085 = vpop.permute.xlu0 %1084
        %vm1102 = vcmask 158848
        %1103 = vst.msk [vmem:[#allocation2] sm:$0xf] %vm1102, %v1055
        %1104 = vst.msk [vmem:[#allocation2 + $0x4] sm:$0xf] %vm1102, %v1057
        %1105 = vst.msk [vmem:[#allocation2 + $0x8] sm:$0xf] %vm1102, %v1059
        %1106 = vst.msk [vmem:[#allocation2 + $0xc] sm:$0xf] %vm1102, %v1061
        %1107 = vst.msk [vmem:[#allocation2 + $0x10] sm:$0xf] %vm1102, %v1063
        %1108 = vst.msk [vmem:[#allocation2 + $0x14] sm:$0xf] %vm1102, %v1065
        %1109 = vst.msk [vmem:[#allocation2 + $0x18] sm:$0xf] %vm1102, %v1067
        %1110 = vst.msk [vmem:[#allocation2 + $0x1c] sm:$0xf] %vm1102, %v1069
        %1111 = vst.msk [vmem:[#allocation2 + $0x20] sm:$0xf] %vm1102, %v1071
        %1112 = vst.msk [vmem:[#allocation2 + $0x24] sm:$0xf] %vm1102, %v1073
        %1113 = vst.msk [vmem:[#allocation2 + $0x28] sm:$0xf] %vm1102, %v1075
        %1114 = vst.msk [vmem:[#allocation2 + $0x2c] sm:$0xf] %vm1102, %v1077
        %1115 = vst.msk [vmem:[#allocation2 + $0x30] sm:$0xf] %vm1102, %v1079
        %1116 = vst.msk [vmem:[#allocation2 + $0x34] sm:$0xf] %vm1102, %v1081
        %1117 = vst.msk [vmem:[#allocation2 + $0x38] sm:$0xf] %vm1102, %v1083
        %1118 = vst.msk [vmem:[#allocation2 + $0x3c] sm:$0xf] %vm1102, %v1085
        %v1127 = vrot.slane %v757, 5
        %v1128 = vrot.slane %v1127, 4
        %v1129 = vrot.slane %v758, 5
        %v1130 = vsel %vm559, %v1128, %v1129
        %v1131 = vrot.slane %v1129, 4
        %v1132 = vrot.slane %v759, 5
        %v1133 = vsel %vm559, %v1131, %v1132
        %v1134 = vrot.slane %v760, 5
        %v1135 = vrot.slane %v1134, 4
        %v1136 = vrot.slane %v761, 5
        %v1137 = vsel %vm559, %v1135, %v1136
        %v1138 = vrot.slane %v1136, 4
        %v1139 = vrot.slane %v762, 5
        %v1140 = vsel %vm559, %v1138, %v1139
        %v1141 = vrot.slane %v763, 5
        %v1142 = vrot.slane %v1141, 4
        %v1143 = vrot.slane %v764, 5
        %v1144 = vsel %vm559, %v1142, %v1143
        %v1145 = vrot.slane %v1143, 4
        %v1146 = vrot.slane %v765, 5
        %v1147 = vsel %vm559, %v1145, %v1146
        %v1148 = vrot.slane %v766, 5
        %v1149 = vrot.slane %v1148, 4
        %v1150 = vrot.slane %v767, 5
        %v1151 = vsel %vm559, %v1149, %v1150
        %v1152 = vrot.slane %v1150, 4
        %v1153 = vrot.slane %v768, 5
        %v1154 = vsel %vm559, %v1152, %v1153
        %v1155 = vrot.slane %v769, 5
        %v1156 = vrot.slane %v1155, 4
        %v1157 = vrot.slane %v770, 5
        %v1158 = vsel %vm559, %v1156, %v1157
        %v1159 = vrot.slane %v1157, 4
        %v1160 = vrot.slane %v771, 5
        %v1161 = vsel %vm559, %v1159, %v1160
        %v1162 = vrot.slane %v772, 5
        %v1163 = vrot.slane %v1162, 4
        %v1164 = vrot.slane %v773, 5
        %v1165 = vsel %vm559, %v1163, %v1164
        %v1166 = vrot.slane %v1164, 4
        %v1167 = vrot.slane %v774, 5
        %v1168 = vsel %vm559, %v1166, %v1167
        %v1169 = vrot.slane %v775, 5
        %v1170 = vrot.slane %v1169, 4
        %v1171 = vrot.slane %v776, 5
        %v1172 = vsel %vm559, %v1170, %v1171
        %v1173 = vrot.slane %v1171, 4
        %v1174 = vrot.slane %v777, 5
        %v1175 = vsel %vm559, %v1173, %v1174
        %v1176 = vrot.slane %v778, 5
        %v1177 = vrot.slane %v1176, 4
        %v1178 = vrot.slane %v779, 5
        %v1179 = vsel %vm559, %v1177, %v1178
        %v1180 = vrot.slane %v1178, 4
        %v1181 = vrot.slane %v780, 5
        %v1182 = vsel %vm559, %v1180, %v1181
        %1183 = vrot.lane.b32.xlu0 %v1130, 20
        %v1184 = vpop.permute.xlu0 %1183
        %1185 = vrot.lane.b32.xlu0 %v1133, 20
        %v1186 = vpop.permute.xlu0 %1185
        %1187 = vrot.lane.b32.xlu0 %v1137, 20
        %v1188 = vpop.permute.xlu0 %1187
        %1189 = vrot.lane.b32.xlu0 %v1140, 20
        %v1190 = vpop.permute.xlu0 %1189
        %1191 = vrot.lane.b32.xlu0 %v1144, 20
        %v1192 = vpop.permute.xlu0 %1191
        %1193 = vrot.lane.b32.xlu0 %v1147, 20
        %v1194 = vpop.permute.xlu0 %1193
        %1195 = vrot.lane.b32.xlu0 %v1151, 20
        %v1196 = vpop.permute.xlu0 %1195
        %1197 = vrot.lane.b32.xlu0 %v1154, 20
        %v1198 = vpop.permute.xlu0 %1197
        %1199 = vrot.lane.b32.xlu0 %v1158, 20
        %v1200 = vpop.permute.xlu0 %1199
        %1201 = vrot.lane.b32.xlu0 %v1161, 20
        %v1202 = vpop.permute.xlu0 %1201
        %1203 = vrot.lane.b32.xlu0 %v1165, 20
        %v1204 = vpop.permute.xlu0 %1203
        %1205 = vrot.lane.b32.xlu0 %v1168, 20
        %v1206 = vpop.permute.xlu0 %1205
        %1207 = vrot.lane.b32.xlu0 %v1172, 20
        %v1208 = vpop.permute.xlu0 %1207
        %1209 = vrot.lane.b32.xlu0 %v1175, 20
        %v1210 = vpop.permute.xlu0 %1209
        %1211 = vrot.lane.b32.xlu0 %v1179, 20
        %v1212 = vpop.permute.xlu0 %1211
        %1213 = vrot.lane.b32.xlu0 %v1182, 20
        %v1214 = vpop.permute.xlu0 %1213
        %vm1231 = vcmask 191648
        %1232 = vst.msk [vmem:[#allocation2] sm:$0xf] %vm1231, %v1184
        %1233 = vst.msk [vmem:[#allocation2 + $0x4] sm:$0xf] %vm1231, %v1186
        %1234 = vst.msk [vmem:[#allocation2 + $0x8] sm:$0xf] %vm1231, %v1188
        %1235 = vst.msk [vmem:[#allocation2 + $0xc] sm:$0xf] %vm1231, %v1190
        %1236 = vst.msk [vmem:[#allocation2 + $0x10] sm:$0xf] %vm1231, %v1192
        %1237 = vst.msk [vmem:[#allocation2 + $0x14] sm:$0xf] %vm1231, %v1194
        %1238 = vst.msk [vmem:[#allocation2 + $0x18] sm:$0xf] %vm1231, %v1196
        %1239 = vst.msk [vmem:[#allocation2 + $0x1c] sm:$0xf] %vm1231, %v1198
        %1240 = vst.msk [vmem:[#allocation2 + $0x20] sm:$0xf] %vm1231, %v1200
        %1241 = vst.msk [vmem:[#allocation2 + $0x24] sm:$0xf] %vm1231, %v1202
        %1242 = vst.msk [vmem:[#allocation2 + $0x28] sm:$0xf] %vm1231, %v1204
        %1243 = vst.msk [vmem:[#allocation2 + $0x2c] sm:$0xf] %vm1231, %v1206
        %1244 = vst.msk [vmem:[#allocation2 + $0x30] sm:$0xf] %vm1231, %v1208
        %1245 = vst.msk [vmem:[#allocation2 + $0x34] sm:$0xf] %vm1231, %v1210
        %1246 = vst.msk [vmem:[#allocation2 + $0x38] sm:$0xf] %vm1231, %v1212
        %1247 = vst.msk [vmem:[#allocation2 + $0x3c] sm:$0xf] %vm1231, %v1214
        %s1248 = sadd.s32 %s156, 2
        %s1249 = smul.u32 %s1248, 3
        %s1250 = smul.addr %s1249, 4
        %s1251 = scalar_lea.vmem %s155, %s1250
        %v1252 = vld [vmem:[%s1251] sm:$0xf]
        %v1253 = vld [vmem:[%s1251 + $0x4] sm:$0xf]
        %v1254 = vld [vmem:[%s1251 + $0x8] sm:$0x1]
        %v1255 = vld [vmem:[%s1251 + $0xc] sm:$0xf]
        %v1256 = vld [vmem:[%s1251 + $0x10] sm:$0xf]
        %v1257 = vld [vmem:[%s1251 + $0x14] sm:$0x1]
        %v1258 = vld [vmem:[%s1251 + $0x18] sm:$0xf]
        %v1259 = vld [vmem:[%s1251 + $0x1c] sm:$0xf]
        %v1260 = vld [vmem:[%s1251 + $0x20] sm:$0x1]
        %v1261 = vld [vmem:[%s1251 + $0x24] sm:$0xf]
        %v1262 = vld [vmem:[%s1251 + $0x28] sm:$0xf]
        %v1263 = vld [vmem:[%s1251 + $0x2c] sm:$0x1]
        %v1264 = vld [vmem:[%s1251 + $0x30] sm:$0xf]
        %v1265 = vld [vmem:[%s1251 + $0x34] sm:$0xf]
        %v1266 = vld [vmem:[%s1251 + $0x38] sm:$0x1]
        %v1267 = vld [vmem:[%s1251 + $0x3c] sm:$0xf]
        %v1268 = vld [vmem:[%s1251 + $0x40] sm:$0xf]
        %v1269 = vld [vmem:[%s1251 + $0x44] sm:$0x1]
        %v1270 = vld [vmem:[%s1251 + $0x48] sm:$0xf]
        %v1271 = vld [vmem:[%s1251 + $0x4c] sm:$0xf]
        %v1272 = vld [vmem:[%s1251 + $0x50] sm:$0x1]
        %v1273 = vld [vmem:[%s1251 + $0x54] sm:$0xf]
        %v1274 = vld [vmem:[%s1251 + $0x58] sm:$0xf]
        %v1275 = vld [vmem:[%s1251 + $0x5c] sm:$0x1]
        %v1276 = vunpack.c.l.bf16 %v1252
        %v1277 = vunpack.c.l.bf16 %v1253
        %v1278 = vunpack.c.l.bf16 %v1254
        %v1279 = vunpack.c.l.bf16 %v1255
        %v1280 = vunpack.c.l.bf16 %v1256
        %v1281 = vunpack.c.l.bf16 %v1257
        %v1282 = vunpack.c.l.bf16 %v1258
        %v1283 = vunpack.c.l.bf16 %v1259
        %v1284 = vunpack.c.l.bf16 %v1260
        %v1285 = vunpack.c.l.bf16 %v1261
        %v1286 = vunpack.c.l.bf16 %v1262
        %v1287 = vunpack.c.l.bf16 %v1263
        %v1288 = vunpack.c.l.bf16 %v1264
        %v1289 = vunpack.c.l.bf16 %v1265
        %v1290 = vunpack.c.l.bf16 %v1266
        %v1291 = vunpack.c.l.bf16 %v1267
        %v1292 = vunpack.c.l.bf16 %v1268
        %v1293 = vunpack.c.l.bf16 %v1269
        %v1294 = vunpack.c.l.bf16 %v1270
        %v1295 = vunpack.c.l.bf16 %v1271
        %v1296 = vunpack.c.l.bf16 %v1272
        %v1297 = vunpack.c.l.bf16 %v1273
        %v1298 = vunpack.c.l.bf16 %v1274
        %v1299 = vunpack.c.l.bf16 %v1275
        %v1300 = vmax.f32 %v1276, 0.0
        %v1301 = vmax.f32 %v1277, 0.0
        %v1302 = vmax.f32 %v1278, 0.0
        %v1303 = vmax.f32 %v1279, 0.0
        %v1304 = vmax.f32 %v1280, 0.0
        %v1305 = vmax.f32 %v1281, 0.0
        %v1306 = vmax.f32 %v1282, 0.0
        %v1307 = vmax.f32 %v1283, 0.0
        %v1308 = vmax.f32 %v1284, 0.0
        %v1309 = vmax.f32 %v1285, 0.0
        %v1310 = vmax.f32 %v1286, 0.0
        %v1311 = vmax.f32 %v1287, 0.0
        %v1312 = vmax.f32 %v1288, 0.0
        %v1313 = vmax.f32 %v1289, 0.0
        %v1314 = vmax.f32 %v1290, 0.0
        %v1315 = vmax.f32 %v1291, 0.0
        %v1316 = vmax.f32 %v1292, 0.0
        %v1317 = vmax.f32 %v1293, 0.0
        %v1318 = vmax.f32 %v1294, 0.0
        %v1319 = vmax.f32 %v1295, 0.0
        %v1320 = vmax.f32 %v1296, 0.0
        %v1321 = vmax.f32 %v1297, 0.0
        %v1322 = vmax.f32 %v1298, 0.0
        %v1323 = vmax.f32 %v1299, 0.0
        %v1324 = vpack.c.bf16 %v1300, %v1300
        %v1325 = vpack.c.bf16 %v1301, %v1301
        %v1326 = vpack.c.bf16 %v1302, %v1302
        %v1327 = vpack.c.bf16 %v1303, %v1303
        %v1328 = vpack.c.bf16 %v1304, %v1304
        %v1329 = vpack.c.bf16 %v1305, %v1305
        %v1330 = vpack.c.bf16 %v1306, %v1306
        %v1331 = vpack.c.bf16 %v1307, %v1307
        %v1332 = vpack.c.bf16 %v1308, %v1308
        %v1333 = vpack.c.bf16 %v1309, %v1309
        %v1334 = vpack.c.bf16 %v1310, %v1310
        %v1335 = vpack.c.bf16 %v1311, %v1311
        %v1336 = vpack.c.bf16 %v1312, %v1312
        %v1337 = vpack.c.bf16 %v1313, %v1313
        %v1338 = vpack.c.bf16 %v1314, %v1314
        %v1339 = vpack.c.bf16 %v1315, %v1315
        %v1340 = vpack.c.bf16 %v1316, %v1316
        %v1341 = vpack.c.bf16 %v1317, %v1317
        %v1342 = vpack.c.bf16 %v1318, %v1318
        %v1343 = vpack.c.bf16 %v1319, %v1319
        %v1344 = vpack.c.bf16 %v1320, %v1320
        %v1345 = vpack.c.bf16 %v1321, %v1321
        %v1346 = vpack.c.bf16 %v1322, %v1322
        %v1347 = vpack.c.bf16 %v1323, %v1323
        %1364 = vrot.lane.b32.xlu0 %v1324, 24
        %v1365 = vpop.permute.xlu0 %1364
        %1366 = vrot.lane.b32.xlu0 %v1325, 24
        %v1367 = vpop.permute.xlu0 %1366
        %1368 = vrot.lane.b32.xlu0 %v1327, 24
        %v1369 = vpop.permute.xlu0 %1368
        %1370 = vrot.lane.b32.xlu0 %v1328, 24
        %v1371 = vpop.permute.xlu0 %1370
        %1372 = vrot.lane.b32.xlu0 %v1330, 24
        %v1373 = vpop.permute.xlu0 %1372
        %1374 = vrot.lane.b32.xlu0 %v1331, 24
        %v1375 = vpop.permute.xlu0 %1374
        %1376 = vrot.lane.b32.xlu0 %v1333, 24
        %v1377 = vpop.permute.xlu0 %1376
        %1378 = vrot.lane.b32.xlu0 %v1334, 24
        %v1379 = vpop.permute.xlu0 %1378
        %1380 = vrot.lane.b32.xlu0 %v1336, 24
        %v1381 = vpop.permute.xlu0 %1380
        %1382 = vrot.lane.b32.xlu0 %v1337, 24
        %v1383 = vpop.permute.xlu0 %1382
        %1384 = vrot.lane.b32.xlu0 %v1339, 24
        %v1385 = vpop.permute.xlu0 %1384
        %1386 = vrot.lane.b32.xlu0 %v1340, 24
        %v1387 = vpop.permute.xlu0 %1386
        %1388 = vrot.lane.b32.xlu0 %v1342, 24
        %v1389 = vpop.permute.xlu0 %1388
        %1390 = vrot.lane.b32.xlu0 %v1343, 24
        %v1391 = vpop.permute.xlu0 %1390
        %1392 = vrot.lane.b32.xlu0 %v1345, 24
        %v1393 = vpop.permute.xlu0 %1392
        %1394 = vrot.lane.b32.xlu0 %v1346, 24
        %v1395 = vpop.permute.xlu0 %1394
        %vm1412 = vcmask 224448
        %1413 = vst.msk [vmem:[#allocation2] sm:$0xf] %vm1412, %v1365
        %1414 = vst.msk [vmem:[#allocation2 + $0x4] sm:$0xf] %vm1412, %v1367
        %1415 = vst.msk [vmem:[#allocation2 + $0x8] sm:$0xf] %vm1412, %v1369
        %1416 = vst.msk [vmem:[#allocation2 + $0xc] sm:$0xf] %vm1412, %v1371
        %1417 = vst.msk [vmem:[#allocation2 + $0x10] sm:$0xf] %vm1412, %v1373
        %1418 = vst.msk [vmem:[#allocation2 + $0x14] sm:$0xf] %vm1412, %v1375
        %1419 = vst.msk [vmem:[#allocation2 + $0x18] sm:$0xf] %vm1412, %v1377
        %1420 = vst.msk [vmem:[#allocation2 + $0x1c] sm:$0xf] %vm1412, %v1379
        %1421 = vst.msk [vmem:[#allocation2 + $0x20] sm:$0xf] %vm1412, %v1381
        %1422 = vst.msk [vmem:[#allocation2 + $0x24] sm:$0xf] %vm1412, %v1383
        %1423 = vst.msk [vmem:[#allocation2 + $0x28] sm:$0xf] %vm1412, %v1385
        %1424 = vst.msk [vmem:[#allocation2 + $0x2c] sm:$0xf] %vm1412, %v1387
        %1425 = vst.msk [vmem:[#allocation2 + $0x30] sm:$0xf] %vm1412, %v1389
        %1426 = vst.msk [vmem:[#allocation2 + $0x34] sm:$0xf] %vm1412, %v1391
        %1427 = vst.msk [vmem:[#allocation2 + $0x38] sm:$0xf] %vm1412, %v1393
        %1428 = vst.msk [vmem:[#allocation2 + $0x3c] sm:$0xf] %vm1412, %v1395
        %v1430 = vshrl.u32 %v1324, 16
        %v1432 = vrot.slane %v1430, 4
        %v1433 = vshll.u32 %v1324, 16
        %v1435 = vrot.slane %v1433, 5
        %v1436 = vor.u32 %v1432, %v1435
        %v1437 = vrot.slane %v1436, 4
        %v1439 = vshll.u32 %v1325, 16
        %v1441 = vrot.slane %v1439, 5
        %v1442 = vsel %vm275, %v1437, %v1441
        %v1443 = vshrl.u32 %v1325, 16
        %v1445 = vrot.slane %v1443, 4
        %v1446 = vor.u32 %v1445, %v1441
        %v1447 = vrot.slane %v1446, 4
        %v1449 = vshll.u32 %v1326, 16
        %v1451 = vrot.slane %v1449, 5
        %v1452 = vsel %vm275, %v1447, %v1451
        %v1454 = vshrl.u32 %v1327, 16
        %v1456 = vrot.slane %v1454, 4
        %v1457 = vshll.u32 %v1327, 16
        %v1459 = vrot.slane %v1457, 5
        %v1460 = vor.u32 %v1456, %v1459
        %v1461 = vrot.slane %v1460, 4
        %v1463 = vshll.u32 %v1328, 16
        %v1465 = vrot.slane %v1463, 5
        %v1466 = vsel %vm275, %v1461, %v1465
        %v1467 = vshrl.u32 %v1328, 16
        %v1469 = vrot.slane %v1467, 4
        %v1470 = vor.u32 %v1469, %v1465
        %v1471 = vrot.slane %v1470, 4
        %v1473 = vshll.u32 %v1329, 16
        %v1475 = vrot.slane %v1473, 5
        %v1476 = vsel %vm275, %v1471, %v1475
        %v1478 = vshrl.u32 %v1330, 16
        %v1480 = vrot.slane %v1478, 4
        %v1481 = vshll.u32 %v1330, 16
        %v1483 = vrot.slane %v1481, 5
        %v1484 = vor.u32 %v1480, %v1483
        %v1485 = vrot.slane %v1484, 4
        %v1487 = vshll.u32 %v1331, 16
        %v1489 = vrot.slane %v1487, 5
        %v1490 = vsel %vm275, %v1485, %v1489
        %v1491 = vshrl.u32 %v1331, 16
        %v1493 = vrot.slane %v1491, 4
        %v1494 = vor.u32 %v1493, %v1489
        %v1495 = vrot.slane %v1494, 4
        %v1497 = vshll.u32 %v1332, 16
        %v1499 = vrot.slane %v1497, 5
        %v1500 = vsel %vm275, %v1495, %v1499
        %v1502 = vshrl.u32 %v1333, 16
        %v1504 = vrot.slane %v1502, 4
        %v1505 = vshll.u32 %v1333, 16
        %v1507 = vrot.slane %v1505, 5
        %v1508 = vor.u32 %v1504, %v1507
        %v1509 = vrot.slane %v1508, 4
        %v1511 = vshll.u32 %v1334, 16
        %v1513 = vrot.slane %v1511, 5
        %v1514 = vsel %vm275, %v1509, %v1513
        %v1515 = vshrl.u32 %v1334, 16
        %v1517 = vrot.slane %v1515, 4
        %v1518 = vor.u32 %v1517, %v1513
        %v1519 = vrot.slane %v1518, 4
        %v1521 = vshll.u32 %v1335, 16
        %v1523 = vrot.slane %v1521, 5
        %v1524 = vsel %vm275, %v1519, %v1523
        %v1526 = vshrl.u32 %v1336, 16
        %v1528 = vrot.slane %v1526, 4
        %v1529 = vshll.u32 %v1336, 16
        %v1531 = vrot.slane %v1529, 5
        %v1532 = vor.u32 %v1528, %v1531
        %v1533 = vrot.slane %v1532, 4
        %v1535 = vshll.u32 %v1337, 16
        %v1537 = vrot.slane %v1535, 5
        %v1538 = vsel %vm275, %v1533, %v1537
        %v1539 = vshrl.u32 %v1337, 16
        %v1541 = vrot.slane %v1539, 4
        %v1542 = vor.u32 %v1541, %v1537
        %v1543 = vrot.slane %v1542, 4
        %v1545 = vshll.u32 %v1338, 16
        %v1547 = vrot.slane %v1545, 5
        %v1548 = vsel %vm275, %v1543, %v1547
        %v1550 = vshrl.u32 %v1339, 16
        %v1552 = vrot.slane %v1550, 4
        %v1553 = vshll.u32 %v1339, 16
        %v1555 = vrot.slane %v1553, 5
        %v1556 = vor.u32 %v1552, %v1555
        %v1557 = vrot.slane %v1556, 4
        %v1559 = vshll.u32 %v1340, 16
        %v1561 = vrot.slane %v1559, 5
        %v1562 = vsel %vm275, %v1557, %v1561
        %v1563 = vshrl.u32 %v1340, 16
        %v1565 = vrot.slane %v1563, 4
        %v1566 = vor.u32 %v1565, %v1561
        %v1567 = vrot.slane %v1566, 4
        %v1569 = vshll.u32 %v1341, 16
        %v1571 = vrot.slane %v1569, 5
        %v1572 = vsel %vm275, %v1567, %v1571
        %v1574 = vshrl.u32 %v1342, 16
        %v1576 = vrot.slane %v1574, 4
        %v1577 = vshll.u32 %v1342, 16
        %v1579 = vrot.slane %v1577, 5
        %v1580 = vor.u32 %v1576, %v1579
        %v1581 = vrot.slane %v1580, 4
        %v1583 = vshll.u32 %v1343, 16
        %v1585 = vrot.slane %v1583, 5
        %v1586 = vsel %vm275, %v1581, %v1585
        %v1587 = vshrl.u32 %v1343, 16
        %v1589 = vrot.slane %v1587, 4
        %v1590 = vor.u32 %v1589, %v1585
        %v1591 = vrot.slane %v1590, 4
        %v1593 = vshll.u32 %v1344, 16
        %v1595 = vrot.slane %v1593, 5
        %v1596 = vsel %vm275, %v1591, %v1595
        %v1598 = vshrl.u32 %v1345, 16
        %v1600 = vrot.slane %v1598, 4
        %v1601 = vshll.u32 %v1345, 16
        %v1603 = vrot.slane %v1601, 5
        %v1604 = vor.u32 %v1600, %v1603
        %v1605 = vrot.slane %v1604, 4
        %v1607 = vshll.u32 %v1346, 16
        %v1609 = vrot.slane %v1607, 5
        %v1610 = vsel %vm275, %v1605, %v1609
        %v1611 = vshrl.u32 %v1346, 16
        %v1613 = vrot.slane %v1611, 4
        %v1614 = vor.u32 %v1613, %v1609
        %v1615 = vrot.slane %v1614, 4
        %v1617 = vshll.u32 %v1347, 16
        %v1619 = vrot.slane %v1617, 5
        %v1620 = vsel %vm275, %v1615, %v1619
        %1621 = vrot.lane.b32.xlu0 %v1442, 28
        %v1622 = vpop.permute.xlu0 %1621
        %1623 = vrot.lane.b32.xlu0 %v1452, 28
        %v1624 = vpop.permute.xlu0 %1623
        %1625 = vrot.lane.b32.xlu0 %v1466, 28
        %v1626 = vpop.permute.xlu0 %1625
        %1627 = vrot.lane.b32.xlu0 %v1476, 28
        %v1628 = vpop.permute.xlu0 %1627
        %1629 = vrot.lane.b32.xlu0 %v1490, 28
        %v1630 = vpop.permute.xlu0 %1629
        %1631 = vrot.lane.b32.xlu0 %v1500, 28
        %v1632 = vpop.permute.xlu0 %1631
        %1633 = vrot.lane.b32.xlu0 %v1514, 28
        %v1634 = vpop.permute.xlu0 %1633
        %1635 = vrot.lane.b32.xlu0 %v1524, 28
        %v1636 = vpop.permute.xlu0 %1635
        %1637 = vrot.lane.b32.xlu0 %v1538, 28
        %v1638 = vpop.permute.xlu0 %1637
        %1639 = vrot.lane.b32.xlu0 %v1548, 28
        %v1640 = vpop.permute.xlu0 %1639
        %1641 = vrot.lane.b32.xlu0 %v1562, 28
        %v1642 = vpop.permute.xlu0 %1641
        %1643 = vrot.lane.b32.xlu0 %v1572, 28
        %v1644 = vpop.permute.xlu0 %1643
        %1645 = vrot.lane.b32.xlu0 %v1586, 28
        %v1646 = vpop.permute.xlu0 %1645
        %1647 = vrot.lane.b32.xlu0 %v1596, 28
        %v1648 = vpop.permute.xlu0 %1647
        %1649 = vrot.lane.b32.xlu0 %v1610, 28
        %v1650 = vpop.permute.xlu0 %1649
        %1651 = vrot.lane.b32.xlu0 %v1620, 28
        %v1652 = vpop.permute.xlu0 %1651
        %vm1669 = vcmask 257248
        %1670 = vst.msk [vmem:[#allocation2] sm:$0xf] %vm1669, %v1622
        %1671 = vst.msk [vmem:[#allocation2 + $0x4] sm:$0xf] %vm1669, %v1624
        %1672 = vst.msk [vmem:[#allocation2 + $0x8] sm:$0xf] %vm1669, %v1626
        %1673 = vst.msk [vmem:[#allocation2 + $0xc] sm:$0xf] %vm1669, %v1628
        %1674 = vst.msk [vmem:[#allocation2 + $0x10] sm:$0xf] %vm1669, %v1630
        %1675 = vst.msk [vmem:[#allocation2 + $0x14] sm:$0xf] %vm1669, %v1632
        %1676 = vst.msk [vmem:[#allocation2 + $0x18] sm:$0xf] %vm1669, %v1634
        %1677 = vst.msk [vmem:[#allocation2 + $0x1c] sm:$0xf] %vm1669, %v1636
        %1678 = vst.msk [vmem:[#allocation2 + $0x20] sm:$0xf] %vm1669, %v1638
        %1679 = vst.msk [vmem:[#allocation2 + $0x24] sm:$0xf] %vm1669, %v1640
        %1680 = vst.msk [vmem:[#allocation2 + $0x28] sm:$0xf] %vm1669, %v1642
        %1681 = vst.msk [vmem:[#allocation2 + $0x2c] sm:$0xf] %vm1669, %v1644
        %1682 = vst.msk [vmem:[#allocation2 + $0x30] sm:$0xf] %vm1669, %v1646
        %1683 = vst.msk [vmem:[#allocation2 + $0x34] sm:$0xf] %vm1669, %v1648
        %1684 = vst.msk [vmem:[#allocation2 + $0x38] sm:$0xf] %vm1669, %v1650
        %1685 = vst.msk [vmem:[#allocation2 + $0x3c] sm:$0xf] %vm1669, %v1652
        %v1694 = vrot.slane %v1324, 5
        %v1695 = vrot.slane %v1694, 4
        %v1696 = vrot.slane %v1325, 5
        %v1697 = vsel %vm559, %v1695, %v1696
        %v1698 = vrot.slane %v1696, 4
        %v1699 = vrot.slane %v1326, 5
        %v1700 = vsel %vm559, %v1698, %v1699
        %v1701 = vrot.slane %v1327, 5
        %v1702 = vrot.slane %v1701, 4
        %v1703 = vrot.slane %v1328, 5
        %v1704 = vsel %vm559, %v1702, %v1703
        %v1705 = vrot.slane %v1703, 4
        %v1706 = vrot.slane %v1329, 5
        %v1707 = vsel %vm559, %v1705, %v1706
        %v1708 = vrot.slane %v1330, 5
        %v1709 = vrot.slane %v1708, 4
        %v1710 = vrot.slane %v1331, 5
        %v1711 = vsel %vm559, %v1709, %v1710
        %v1712 = vrot.slane %v1710, 4
        %v1713 = vrot.slane %v1332, 5
        %v1714 = vsel %vm559, %v1712, %v1713
        %v1715 = vrot.slane %v1333, 5
        %v1716 = vrot.slane %v1715, 4
        %v1717 = vrot.slane %v1334, 5
        %v1718 = vsel %vm559, %v1716, %v1717
        %v1719 = vrot.slane %v1717, 4
        %v1720 = vrot.slane %v1335, 5
        %v1721 = vsel %vm559, %v1719, %v1720
        %v1722 = vrot.slane %v1336, 5
        %v1723 = vrot.slane %v1722, 4
        %v1724 = vrot.slane %v1337, 5
        %v1725 = vsel %vm559, %v1723, %v1724
        %v1726 = vrot.slane %v1724, 4
        %v1727 = vrot.slane %v1338, 5
        %v1728 = vsel %vm559, %v1726, %v1727
        %v1729 = vrot.slane %v1339, 5
        %v1730 = vrot.slane %v1729, 4
        %v1731 = vrot.slane %v1340, 5
        %v1732 = vsel %vm559, %v1730, %v1731
        %v1733 = vrot.slane %v1731, 4
        %v1734 = vrot.slane %v1341, 5
        %v1735 = vsel %vm559, %v1733, %v1734
        %v1736 = vrot.slane %v1342, 5
        %v1737 = vrot.slane %v1736, 4
        %v1738 = vrot.slane %v1343, 5
        %v1739 = vsel %vm559, %v1737, %v1738
        %v1740 = vrot.slane %v1738, 4
        %v1741 = vrot.slane %v1344, 5
        %v1742 = vsel %vm559, %v1740, %v1741
        %v1743 = vrot.slane %v1345, 5
        %v1744 = vrot.slane %v1743, 4
        %v1745 = vrot.slane %v1346, 5
        %v1746 = vsel %vm559, %v1744, %v1745
        %v1747 = vrot.slane %v1745, 4
        %v1748 = vrot.slane %v1347, 5
        %v1749 = vsel %vm559, %v1747, %v1748
        %1750 = vrot.lane.b32.xlu0 %v1697, 32
        %v1751 = vpop.permute.xlu0 %1750
        %1752 = vrot.lane.b32.xlu0 %v1700, 32
        %v1753 = vpop.permute.xlu0 %1752
        %1754 = vrot.lane.b32.xlu0 %v1704, 32
        %v1755 = vpop.permute.xlu0 %1754
        %1756 = vrot.lane.b32.xlu0 %v1707, 32
        %v1757 = vpop.permute.xlu0 %1756
        %1758 = vrot.lane.b32.xlu0 %v1711, 32
        %v1759 = vpop.permute.xlu0 %1758
        %1760 = vrot.lane.b32.xlu0 %v1714, 32
        %v1761 = vpop.permute.xlu0 %1760
        %1762 = vrot.lane.b32.xlu0 %v1718, 32
        %v1763 = vpop.permute.xlu0 %1762
        %1764 = vrot.lane.b32.xlu0 %v1721, 32
        %v1765 = vpop.permute.xlu0 %1764
        %1766 = vrot.lane.b32.xlu0 %v1725, 32
        %v1767 = vpop.permute.xlu0 %1766
        %1768 = vrot.lane.b32.xlu0 %v1728, 32
        %v1769 = vpop.permute.xlu0 %1768
        %1770 = vrot.lane.b32.xlu0 %v1732, 32
        %v1771 = vpop.permute.xlu0 %1770
        %1772 = vrot.lane.b32.xlu0 %v1735, 32
        %v1773 = vpop.permute.xlu0 %1772
        %1774 = vrot.lane.b32.xlu0 %v1739, 32
        %v1775 = vpop.permute.xlu0 %1774
        %1776 = vrot.lane.b32.xlu0 %v1742, 32
        %v1777 = vpop.permute.xlu0 %1776
        %1778 = vrot.lane.b32.xlu0 %v1746, 32
        %v1779 = vpop.permute.xlu0 %1778
        %1780 = vrot.lane.b32.xlu0 %v1749, 32
        %v1781 = vpop.permute.xlu0 %1780
        %vm1798 = vcmask 290048
        %1799 = vst.msk [vmem:[#allocation2] sm:$0xf] %vm1798, %v1751
        %1800 = vst.msk [vmem:[#allocation2 + $0x4] sm:$0xf] %vm1798, %v1753
        %1801 = vst.msk [vmem:[#allocation2 + $0x8] sm:$0xf] %vm1798, %v1755
        %1802 = vst.msk [vmem:[#allocation2 + $0xc] sm:$0xf] %vm1798, %v1757
        %1803 = vst.msk [vmem:[#allocation2 + $0x10] sm:$0xf] %vm1798, %v1759
        %1804 = vst.msk [vmem:[#allocation2 + $0x14] sm:$0xf] %vm1798, %v1761
        %1805 = vst.msk [vmem:[#allocation2 + $0x18] sm:$0xf] %vm1798, %v1763
        %1806 = vst.msk [vmem:[#allocation2 + $0x1c] sm:$0xf] %vm1798, %v1765
        %1807 = vst.msk [vmem:[#allocation2 + $0x20] sm:$0xf] %vm1798, %v1767
        %1808 = vst.msk [vmem:[#allocation2 + $0x24] sm:$0xf] %vm1798, %v1769
        %1809 = vst.msk [vmem:[#allocation2 + $0x28] sm:$0xf] %vm1798, %v1771
        %1810 = vst.msk [vmem:[#allocation2 + $0x2c] sm:$0xf] %vm1798, %v1773
        %1811 = vst.msk [vmem:[#allocation2 + $0x30] sm:$0xf] %vm1798, %v1775
        %1812 = vst.msk [vmem:[#allocation2 + $0x34] sm:$0xf] %vm1798, %v1777
        %1813 = vst.msk [vmem:[#allocation2 + $0x38] sm:$0xf] %vm1798, %v1779
        %1814 = vst.msk [vmem:[#allocation2 + $0x3c] sm:$0xf] %vm1798, %v1781
        %v1815 = vld [vmem:[%s1] sm:$0xf]
        %v1816 = vld [vmem:[#allocation2] sm:$0xf]
        %v1817 = vld [vmem:[#allocation2 + $0x4] sm:$0xf]
        %v1818 = vld [vmem:[#allocation2 + $0x8] sm:$0xf]
        %v1819 = vld [vmem:[#allocation2 + $0xc] sm:$0xf]
        %v1820 = vld [vmem:[#allocation2 + $0x10] sm:$0xf]
        %v1821 = vld [vmem:[#allocation2 + $0x14] sm:$0xf]
        %v1822 = vld [vmem:[#allocation2 + $0x18] sm:$0xf]
        %v1823 = vld [vmem:[#allocation2 + $0x1c] sm:$0xf]
        %v1824 = vld [vmem:[#allocation2 + $0x20] sm:$0xf]
        %v1825 = vld [vmem:[#allocation2 + $0x24] sm:$0xf]
        %v1826 = vld [vmem:[#allocation2 + $0x28] sm:$0xf]
        %v1827 = vld [vmem:[#allocation2 + $0x2c] sm:$0xf]
        %v1828 = vld [vmem:[#allocation2 + $0x30] sm:$0xf]
        %v1829 = vld [vmem:[#allocation2 + $0x34] sm:$0xf]
        %v1830 = vld [vmem:[#allocation2 + $0x38] sm:$0xf]
        %v1831 = vld [vmem:[#allocation2 + $0x3c] sm:$0xf]
        %v1848 = vunpack.c.l.b16 %v1816
        %v1849 = vunpack.c.l.b16 %v1817
        %v1850 = vunpack.c.l.b16 %v1818
        %v1851 = vunpack.c.l.b16 %v1819
        %v1852 = vunpack.c.l.b16 %v1820
        %v1853 = vunpack.c.l.b16 %v1821
        %v1854 = vunpack.c.l.b16 %v1822
        %v1855 = vunpack.c.l.b16 %v1823
        %v1856 = vunpack.c.l.b16 %v1824
        %v1857 = vunpack.c.l.b16 %v1825
        %v1858 = vunpack.c.l.b16 %v1826
        %v1859 = vunpack.c.l.b16 %v1827
        %v1860 = vunpack.c.l.b16 %v1828
        %v1861 = vunpack.c.l.b16 %v1829
        %v1862 = vunpack.c.l.b16 %v1830
        %v1863 = vunpack.c.l.b16 %v1831
        %v1864 = vpack.c.b16 %v1849, %v1848
        %v1865 = vpack.c.b16 %v1851, %v1850
        %v1866 = vpack.c.b16 %v1853, %v1852
        %v1867 = vpack.c.b16 %v1855, %v1854
        %v1868 = vpack.c.b16 %v1857, %v1856
        %v1869 = vpack.c.b16 %v1859, %v1858
        %v1870 = vpack.c.b16 %v1861, %v1860
        %v1871 = vpack.c.b16 %v1863, %v1862
        %vm1872 = vcmask 293888
        %v1874 = vsel %vm1872, %v1815, 0
        %v1877 = vsel %vm1872, %v1864, 0
        %v1880 = vsel %vm1872, %v1865, 0
        %v1883 = vsel %vm1872, %v1866, 0
        %v1886 = vsel %vm1872, %v1867, 0
        %v1889 = vsel %vm1872, %v1868, 0
        %v1892 = vsel %vm1872, %v1869, 0
        %v1895 = vsel %vm1872, %v1870, 0
        %v1898 = vsel %vm1872, %v1871, 0
        %1900 = vmatpush.bf16.xpose.msra.mxu0 %v1898
        %1901 = vmatpush.bf16.xpose.msra.mxu0 %v1895
        %1902 = vmatpush.bf16.xpose.msra.mxu0 %v1892
        %1903 = vmatpush.bf16.xpose.msra.mxu0 %v1889
        %1904 = vmatpush.bf16.xpose.msra.mxu0 %v1886
        %1905 = vmatpush.bf16.xpose.msra.mxu0 %v1883
        %1906 = vmatpush.bf16.xpose.msra.mxu0 %v1880
        %1907 = vmatpush.bf16.xpose.msra.mxu0 %v1877
        %1908 = vmatmul.bf16.gmra.mxu0 %v1874
        %v1909 = vpop.f32.mrf.mxu0
        %v1910 = vadd.f32 0.0, %v1909
        %v1911 = vpop.f32.mrf.mxu0
        %1912 = vdwg.mxu0
        %1913 = vst [vmem:[%s150] sm:$0xff] %v1910
        %s1914 = sand.u32 %s85, 1
        %s1915 = scalar_lea.sflag [#allocation4], %s1914
        %s1916 = sand.u32 %s85, 1
        %s1917 = smul.addr %s1916, 8
        %s1918 = scalar_lea.vmem [#allocation3], %s1917
        // Predicated region
        $region29: #{tpu_custom_call.1} parent=27 // pred_check
          %p1919 = pneg %p95
        $region30: #{tpu_custom_call.1} parent=27 // pred_check_branch
          %1921 = sbr.rel (%p1919) target = $region32
        $region31: #{tpu_custom_call.1} parent=27 // pred_region
          %1923 = vsyncadd %s1915, 0
          %s1924 = smul.addr %s20, 2
          %s1925 = sadd.s32 %s21, %s1924
          %s1926 = smul.addr %s1925, 8
          %s1927 = scalar_lea.hbm %s2, %s1926
          %s1929 = sshll.u32 %s1918, 4
          %s1930 = int_to_ptr.vmem [resolvable:$true] %s1929
          %s1931 = sshll.u32 %s1927, 4
          %s1932 = int_to_ptr.hbm [resolvable:$true] %s1931
          %1934 = dma.vmem_to_hbm [thread:$0]  %s1930, 128, %s1932, %s1915
        $region32: #{tpu_custom_call.1} parent=27 // pred_fallthru
          _
      $region28: #{tpu_custom_call.1} parent=5 // pred_fallthru
        _
      %p1935 = scmp.le.s32.totalorder 2, %s11
      // Predicated region
      $region33: #{tpu_custom_call.1} parent=5 // pred_check
        %p1936 = pneg %p1935
      $region34: #{tpu_custom_call.1} parent=5 // pred_check_branch
        %1938 = sbr.rel (%p1936) target = $region36
      $region35: #{tpu_custom_call.1} parent=5 // pred_region
        %s1939 = ssub.s32 %s11, 2
        // Predicated region
        $region37: #{tpu_custom_call.1} parent=35 // pred_check
          %p1940 = pneg %p101
        $region38: #{tpu_custom_call.1} parent=35 // pred_check_branch
          %1942 = sbr.rel (%p1940) target = $region40
        $region39: #{tpu_custom_call.1} parent=35 // pred_region
          %s1943 = sand.u32 %s86, 1
          %s1944 = scalar_lea.sflag [#allocation4], %s1943
          %s1945 = sand.u32 %s86, 1
          %s1946 = smul.addr %s1945, 8
          %s1947 = scalar_lea.vmem [#allocation3], %s1946
          %1949 = dma.done %s1944, 128
        $region40: #{tpu_custom_call.1} parent=35 // pred_fallthru
          _
      $region36: #{tpu_custom_call.1} parent=5 // pred_fallthru
        _
    $region6: #{tpu_custom_call.1} parent=1 // loop_footer
      %s15 = sadd.s32 1, %s11
    $region7: #{tpu_custom_call.1} parent=1 // loop_footer_branch
      %10 = sbr.rel target = $region3
    $region8: #{tpu_custom_call.1} parent=1 // loop_exit
      _
    %1950 = vsyncpa [#allocation4], 1
    %s1951 = scalar_lea.sflag [#allocation4], 1
    %1952 = vsyncpa %s1951, 1

</llo_original>
